<compile_context>
chip_gen: v5e
topology: v5e:2x2
jax: 0.10.0
libtpu: 0.0.40
codegen_flags: <defaults>
</compile_context>

<pallas_src>
import numpy as np

import jax
import jax.numpy as jnp
from jax.experimental import pallas as pl
from jax.experimental.pallas import tpu as pltpu

# ------------------------- model hyper-parameters -------------------------
PLAN_VOCAB = 24
PARENT_POS_VOCAB = 12
D_MODEL = 32
NUM_HEADS = 4
D_HEAD = D_MODEL // NUM_HEADS
D_FF = 64
NUM_LAYERS = 2
D_QUERY_FEAT = 16
PLAN_PAD_IDX = 0
PARENT_POS_PAD_IDX = 0
USE_POS_EMBS = True
MLP_HIDDEN = 128

B = 2          # batch size
S = 8          # sequence length
LN_EPS = 1e-5  # PyTorch TransformerEncoderLayer default layer_norm_eps
NEG_INF = -1e30

LANE = 128

# ---- weight slab row layout (all blocks start at lane 0, sublane-aligned) ----
W_QKV_OFF = 0            # 32 rows, lanes 0:96  = [Wq*scale | Wk | Wv]
W_O_OFF = 32             # 32 rows, lanes 0:32  = Wo
W_FF1_OFF = 64           # 32 rows, lanes 0:64  = W1
W_FF2_OFF = 96           # 64 rows, lanes 0:32  = W2
W_ROWS_PER_LAYER = 160
W_MLP1Q_OFF = NUM_LAYERS * W_ROWS_PER_LAYER      # 320, 16 rows (query-feat part of mw1)
W_MLP1R_OFF = W_MLP1Q_OFF + D_QUERY_FEAT         # 336, 32 rows (root part of mw1)
W_MLP2_OFF = W_MLP1R_OFF + D_MODEL               # 368, 128 rows
W_MLP3_OFF = W_MLP2_OFF + MLP_HIDDEN             # 496, 128 rows (col 0 real, rest 0)
W_TOTAL_ROWS = W_MLP3_OFF + MLP_HIDDEN           # 624

# ---- vector slab row layout (one row per vector, lane offset 0) ----
V_BQKV, V_BO, V_LN1G, V_LN1B, V_B1, V_B2, V_LN2G, V_LN2B = range(8)
V_ROWS_PER_LAYER = 8
V_MB1 = NUM_LAYERS * V_ROWS_PER_LAYER            # 16
V_MB2 = V_MB1 + 1
V_MB3 = V_MB2 + 1
V_TOTAL_ROWS = 24                                # padded to a sublane multiple


def _layer_norm(x, g, b):
    mu = jnp.mean(x, axis=-1, keepdims=True)
    xc = x - mu
    var = jnp.mean(xc * xc, axis=-1, keepdims=True)
    return xc * jax.lax.rsqrt(var + LN_EPS) * g + b


# ----------------------------- fused kernel --------------------------------
# Single invocation (grid=()).  5 input refs: activations (x, bias, qf) plus
# two lane-dense parameter slabs; 2 outputs (encoder state, padded MLP out).
def fwd_kernel(x_ref, bias_ref, qf_ref, w_ref, v_ref, enc_ref, out_ref):

    def vrow(r, width):
        # (1, width) bias/LN row; broadcasts over the 16 token sublanes.
        return v_ref[r:r + 1, 0:width]

    h = x_ref[...]                                   # (B*S, D_MODEL)
    bias = bias_ref[...]                             # (H*B, 1, S) key-padding bias

    for l in range(NUM_LAYERS):                      # static unroll
        wr = l * W_ROWS_PER_LAYER
        vr = l * V_ROWS_PER_LAYER

        # ---- fused Q/K/V projection: ONE MXU issue per layer ----------------
        qkv = jnp.dot(h, w_ref[wr + W_QKV_OFF:wr + W_QKV_OFF + D_MODEL, 0:3 * D_MODEL],
                      preferred_element_type=jnp.float32)        # (B*S, 96)
        qkv = qkv + vrow(vr + V_BQKV, 3 * D_MODEL)

        # ---- head split: 8-lane slices + leading-dim stack (XLU work only) --
        def heads(base):
            # -> (H*B, S, Dh) with row index n = head*B + batch
            return jnp.concatenate(
                [qkv[:, base + hh * D_HEAD: base + (hh + 1) * D_HEAD]
                 .reshape(B, S, D_HEAD) for hh in range(NUM_HEADS)], axis=0)

        qh = heads(0)
        kh = heads(D_MODEL)
        vh = heads(2 * D_MODEL)

        # ---- scores + ONE softmax over all heads -----------------------------
        s = jnp.einsum('nqd,nkd->nqk', qh, kh,
                       preferred_element_type=jnp.float32)        # (H*B, S, S)
        s = s + bias                                              # key padding
        s = s - jnp.max(s, axis=-1, keepdims=True)
        p = jnp.exp(s)
        p = p * pl.reciprocal(jnp.sum(p, axis=-1, keepdims=True), approx=False)

        o = jnp.einsum('nqk,nkd->nqd', p, vh,
                       preferred_element_type=jnp.float32)        # (H*B, S, Dh)

        # ---- output projection: sum_h o_h @ Wo_h == concat(heads) @ Wo ------
        o3 = o.reshape(NUM_HEADS, B * S, D_HEAD)                  # leading-dim only
        wo3 = w_ref[wr + W_O_OFF:wr + W_O_OFF + D_MODEL, 0:D_MODEL].reshape(
            NUM_HEADS, D_HEAD, D_MODEL)
        attn = jnp.sum(jnp.einsum('hnd,hde->hne', o3, wo3,
                                  preferred_element_type=jnp.float32), axis=0)
        attn = attn + vrow(vr + V_BO, D_MODEL)

        x1 = _layer_norm(h + attn, vrow(vr + V_LN1G, D_MODEL), vrow(vr + V_LN1B, D_MODEL))

        # ---- feed forward (ReLU) + residual + layernorm 2 --------------------
        f = jnp.dot(x1, w_ref[wr + W_FF1_OFF:wr + W_FF1_OFF + D_MODEL, 0:D_FF],
                    preferred_element_type=jnp.float32) + vrow(vr + V_B1, D_FF)
        f = jnp.maximum(f, 0.0)
        f = jnp.dot(f, w_ref[wr + W_FF2_OFF:wr + W_FF2_OFF + D_FF, 0:D_MODEL],
                    preferred_element_type=jnp.float32) + vrow(vr + V_B2, D_MODEL)
        h = _layer_norm(x1 + f, vrow(vr + V_LN2G, D_MODEL), vrow(vr + V_LN2B, D_MODEL))

    # encoder output in its native (B*S, D) layout
    enc_ref[...] = h

    # ---- fused MLP head ------------------------------------------------------
    # root token (sequence position 0) of each batch element: strided sublane read.
    root = enc_ref[pl.ds(0, B, stride=S), :]                      # rows {0, S} -> (B, D)
    # concat(query_feats, root) @ W1 done as two dots (no lane concat).
    z = (jnp.dot(qf_ref[...], w_ref[W_MLP1Q_OFF:W_MLP1Q_OFF + D_QUERY_FEAT, :],
                 preferred_element_type=jnp.float32)
         + jnp.dot(root, w_ref[W_MLP1R_OFF:W_MLP1R_OFF + D_MODEL, :],
                   preferred_element_type=jnp.float32)
         + vrow(V_MB1, MLP_HIDDEN))
    z = jnp.maximum(z, 0.0)
    z = jnp.dot(z, w_ref[W_MLP2_OFF:W_MLP2_OFF + MLP_HIDDEN, :],
                preferred_element_type=jnp.float32) + vrow(V_MB2, MLP_HIDDEN)
    z = jnp.maximum(z, 0.0)
    # lane-dense (B, 128) output; column 0 is the real scalar prediction.
    out_ref[...] = jnp.dot(z, w_ref[W_MLP3_OFF:W_MLP3_OFF + MLP_HIDDEN, :],
                           preferred_element_type=jnp.float32) + vrow(V_MB3, MLP_HIDDEN)


def run_model(x2, bias_hb, query_feats, pk):
    # Gridless: the whole working set (<350 KB) is VMEM-resident; this kernel
    # is MXU-issue bound, not bandwidth bound.  (For large batches on v7x one
    # would add a "parallel" batch grid axis to use the second TensorCore;
    # pointless at B=2.)
    vmem = pl.BlockSpec(memory_space=pltpu.MemorySpace.VMEM)
    enc2d, out_pad = pl.pallas_call(
        fwd_kernel,
        out_shape=(jax.ShapeDtypeStruct((B * S, D_MODEL), jnp.float32),
                   jax.ShapeDtypeStruct((B, MLP_HIDDEN), jnp.float32)),
        in_specs=[vmem] * 5,
        out_specs=(vmem, vmem),
    )(x2, bias_hb, query_feats, pk['w_slab'], pk['v_slab'])
    return enc2d, out_pad[:, :1]


# ------------------------ host-side parameter packing -----------------------
def pack_params(p):
    # Two lane-dense f32 slabs.  1/sqrt(d_head) is folded into Wq / bq.
    # NOTE: a bf16-weight variant (halves DMA bytes / MXU passes on v6e/v7x) is
    # possible but would endanger the 1e-3 encoder tolerance; kept f32 here.
    scale = 1.0 / float(np.sqrt(D_HEAD))
    w = np.zeros((W_TOTAL_ROWS, LANE), np.float32)
    v = np.zeros((V_TOTAL_ROWS, LANE), np.float32)

    wqkv = np.asarray(p['wqkv'], np.float32)        # (L, D, 3D)
    bqkv = np.asarray(p['bqkv'], np.float32)        # (L, 1, 3D)
    wo = np.asarray(p['wo'], np.float32)
    w1 = np.asarray(p['w1'], np.float32)
    w2 = np.asarray(p['w2'], np.float32)

    for l in range(NUM_LAYERS):
        r = l * W_ROWS_PER_LAYER
        qkv_w = wqkv[l].copy()
        qkv_w[:, :D_MODEL] *= scale                 # fold attention scale into Wq
        w[r + W_QKV_OFF:r + W_QKV_OFF + D_MODEL, 0:3 * D_MODEL] = qkv_w
        w[r + W_O_OFF:r + W_O_OFF + D_MODEL, 0:D_MODEL] = wo[l]
        w[r + W_FF1_OFF:r + W_FF1_OFF + D_MODEL, 0:D_FF] = w1[l]
        w[r + W_FF2_OFF:r + W_FF2_OFF + D_FF, 0:D_MODEL] = w2[l]

        vr = l * V_ROWS_PER_LAYER
        bq = bqkv[l, 0].copy()
        bq[:D_MODEL] *= scale                       # fold scale into bq
        v[vr + V_BQKV, 0:3 * D_MODEL] = bq
        v[vr + V_BO, 0:D_MODEL] = np.asarray(p['bo'][l, 0])
        v[vr + V_LN1G, 0:D_MODEL] = np.asarray(p['ln1g'][l, 0])
        v[vr + V_LN1B, 0:D_MODEL] = np.asarray(p['ln1b'][l, 0])
        v[vr + V_B1, 0:D_FF] = np.asarray(p['b1'][l, 0])
        v[vr + V_B2, 0:D_MODEL] = np.asarray(p['b2'][l, 0])
        v[vr + V_LN2G, 0:D_MODEL] = np.asarray(p['ln2g'][l, 0])
        v[vr + V_LN2B, 0:D_MODEL] = np.asarray(p['ln2b'][l, 0])

    mw1 = np.asarray(p['mw1'], np.float32)
    w[W_MLP1Q_OFF:W_MLP1Q_OFF + D_QUERY_FEAT, :] = mw1[:D_QUERY_FEAT]
    w[W_MLP1R_OFF:W_MLP1R_OFF + D_MODEL, :] = mw1[D_QUERY_FEAT:]
    w[W_MLP2_OFF:W_MLP2_OFF + MLP_HIDDEN, :] = np.asarray(p['mw2'], np.float32)
    w[W_MLP3_OFF:W_MLP3_OFF + MLP_HIDDEN, 0:1] = np.asarray(p['mw3'], np.float32)
    v[V_MB1, :] = np.asarray(p['mb1'][0])
    v[V_MB2, :] = np.asarray(p['mb2'][0])
    v[V_MB3, 0:1] = np.asarray(p['mb3'][0])

    return dict(embed=p['embed'], pos_embed=p['pos_embed'],
                w_slab=jnp.asarray(w), v_slab=jnp.asarray(v))


# ----------------------------- full forward ---------------------------------
@jax.jit
def transformer_forward(packed, query_feats, src, parent_pos):
    # glue: embedding gather (padding rows are zero) + positional embedding.
    x = packed['embed'][src]
    if USE_POS_EMBS:
        x = x + packed['pos_embed'][parent_pos]
    x2 = x.reshape(B * S, D_MODEL).astype(jnp.float32)            # batch-folded
    bias = jnp.where(src == PLAN_PAD_IDX, NEG_INF, 0.0).astype(jnp.float32)[:, None, :]
    bias_hb = jnp.tile(bias, (NUM_HEADS, 1, 1))                   # (H*B, 1, S), n = h*B + b
    qf = query_feats.astype(jnp.float32)
    enc2d, out = run_model(x2, bias_hb, qf, packed)               # one fused kernel
    return out, enc2d.reshape(B, S, D_MODEL)


# -------------------------- pure-JAX reference ------------------------------
def reference_forward(params, query_feats, src, parent_pos):
    prec = jax.lax.Precision.HIGHEST
    x = params['embed'][src]
    if USE_POS_EMBS:
        x = x + params['pos_embed'][parent_pos]
    x = x.astype(jnp.float32)
    bias = jnp.where(src == PLAN_PAD_IDX, NEG_INF, 0.0).astype(jnp.float32)  # (B,S)
    for l in range(NUM_LAYERS):
        qkv = jnp.einsum('bsd,de->bse', x, params['wqkv'][l], precision=prec) + params['bqkv'][l]
        q, k, v = jnp.split(qkv, 3, axis=-1)
        sh = lambda t: t.reshape(B, S, NUM_HEADS, D_HEAD).transpose(0, 2, 1, 3)
        qh, kh, vh = sh(q), sh(k), sh(v)
        s = jnp.einsum('bhqd,bhkd->bhqk', qh, kh, precision=prec) / np.sqrt(D_HEAD)
        s = s + bias[:, None, None, :]
        p = jax.nn.softmax(s, axis=-1)
        attn = jnp.einsum('bhqk,bhkd->bhqd', p, vh, precision=prec)
        attn = attn.transpose(0, 2, 1, 3).reshape(B, S, D_MODEL)
        attn = jnp.einsum('bsd,de->bse', attn, params['wo'][l], precision=prec) + params['bo'][l]
        x = _layer_norm(x + attn, params['ln1g'][l], params['ln1b'][l])
        f = jnp.maximum(jnp.einsum('bsd,df->bsf', x, params['w1'][l], precision=prec)
                        + params['b1'][l], 0.0)
        f = jnp.einsum('bsf,fd->bsd', f, params['w2'][l], precision=prec) + params['b2'][l]
        x = _layer_norm(x + f, params['ln2g'][l], params['ln2b'][l])
    root = x[:, 0, :]
    h = jnp.concatenate([query_feats.astype(jnp.float32), root], axis=1)
    h = jnp.maximum(jnp.einsum('bi,ij->bj', h, params['mw1'], precision=prec) + params['mb1'], 0.0)
    h = jnp.maximum(jnp.einsum('bi,ij->bj', h, params['mw2'], precision=prec) + params['mb2'], 0.0)
    out = jnp.einsum('bi,ij->bj', h, params['mw3'], precision=prec) + params['mb3']
    return out, x


# ------------------------ deterministic parameter init ----------------------
def init_params(key):
    ks = jax.random.split(key, 10)

    def w(k, shape):
        return 0.02 * jax.random.normal(k, shape, dtype=jnp.float32)

    L = NUM_LAYERS
    return dict(
        embed=w(ks[0], (PLAN_VOCAB, D_MODEL)).at[PLAN_PAD_IDX].set(0.0),
        pos_embed=w(ks[1], (PARENT_POS_VOCAB, D_MODEL)).at[PARENT_POS_PAD_IDX].set(0.0),
        wqkv=w(ks[2], (L, D_MODEL, 3 * D_MODEL)),
        bqkv=jnp.zeros((L, 1, 3 * D_MODEL), jnp.float32),
        wo=w(ks[3], (L, D_MODEL, D_MODEL)),
        bo=jnp.zeros((L, 1, D_MODEL), jnp.float32),
        w1=w(ks[4], (L, D_MODEL, D_FF)),
        b1=jnp.zeros((L, 1, D_FF), jnp.float32),
        w2=w(ks[5], (L, D_FF, D_MODEL)),
        b2=jnp.zeros((L, 1, D_MODEL), jnp.float32),
        ln1g=jnp.ones((L, 1, D_MODEL), jnp.float32),
        ln1b=jnp.zeros((L, 1, D_MODEL), jnp.float32),
        ln2g=jnp.ones((L, 1, D_MODEL), jnp.float32),
        ln2b=jnp.zeros((L, 1, D_MODEL), jnp.float32),
        mw1=w(ks[6], (D_QUERY_FEAT + D_MODEL, MLP_HIDDEN)),
        mb1=jnp.zeros((1, MLP_HIDDEN), jnp.float32),
        mw2=w(ks[7], (MLP_HIDDEN, MLP_HIDDEN)),
        mb2=jnp.zeros((1, MLP_HIDDEN), jnp.float32),
        mw3=w(ks[8], (MLP_HIDDEN, 1)),
        mb3=jnp.zeros((1, 1), jnp.float32),
    )


if __name__ == "__main__":
    key = jax.random.PRNGKey(0)
    kq, ks_, kp_, kw = jax.random.split(key, 4)

    query_feats = jax.random.normal(kq, (B, D_QUERY_FEAT), dtype=jnp.float32)
    lengths = jnp.array([6, 5])
    valid = jnp.arange(S)[None, :] < lengths[:, None]
    src = jnp.where(valid, jax.random.randint(ks_, (B, S), 1, PLAN_VOCAB),
                    PLAN_PAD_IDX)                       # int plan tokens, 0 = pad
    parent_pos = jnp.where(valid,
                           jax.random.randint(kp_, (B, S), 1, PARENT_POS_VOCAB),
                           PARENT_POS_PAD_IDX)

    params = init_params(kw)
    packed = pack_params(params)

    out, encoded = transformer_forward(packed, query_feats, src, parent_pos)
    out = jax.block_until_ready(out)
    assert out.shape == (B, 1) and out.dtype == jnp.float32

    ref_out, ref_encoded = reference_forward(params, query_feats, src, parent_pos)
    assert np.allclose(np.asarray(encoded), np.asarray(ref_encoded),
                       rtol=1e-3, atol=1e-3)
    assert np.allclose(np.asarray(out), np.asarray(ref_out),
                       rtol=1e-2, atol=1e-4)

    print("KERNEL_OK")
</pallas_src>

<mosaic_0001>
module attributes {stable_mosaic.version = 11 : i64} {
  func.func @fwd_kernel(%arg0: memref<16x32xf32, #tpu.memory_space<vmem>>, %arg1: memref<8x1x8xf32, #tpu.memory_space<vmem>>, %arg2: memref<2x16xf32, #tpu.memory_space<vmem>>, %arg3: memref<624x128xf32, #tpu.memory_space<vmem>>, %arg4: memref<24x128xf32, #tpu.memory_space<vmem>>, %arg5: memref<16x32xf32, #tpu.memory_space<vmem>>, %arg6: memref<2x128xf32, #tpu.memory_space<vmem>>) attributes {dimension_semantics = [], scalar_prefetch = 0 : i64, scratch_operands = 0 : i64, tpu.core_type = #tpu.core_type<tc>} {
    %c0 = arith.constant 0 : index
    %c0_0 = arith.constant 0 : index
    %0 = vector.load %arg0[%c0, %c0_0] : memref<16x32xf32, #tpu.memory_space<vmem>>, vector<16x32xf32>
    %c0_1 = arith.constant 0 : index
    %c0_2 = arith.constant 0 : index
    %c0_3 = arith.constant 0 : index
    %1 = vector.load %arg1[%c0_1, %c0_2, %c0_3] : memref<8x1x8xf32, #tpu.memory_space<vmem>>, vector<8x1x8xf32>
    %c0_4 = arith.constant 0 : index
    %c0_5 = arith.constant 0 : index
    %2 = vector.load %arg3[%c0_4, %c0_5] : memref<624x128xf32, #tpu.memory_space<vmem>>, vector<32x96xf32>
    %cst = arith.constant dense<0.000000e+00> : vector<16x96xf32>
    %3 = tpu.matmul %0, %2, %cst {dimension_numbers = #tpu.dot_dimension_numbers<[1], [0], [0], [1], [0, 0, 1, 1], [], []>} : vector<16x32xf32>, vector<32x96xf32>, vector<16x96xf32> -> vector<16x96xf32>
    %c0_6 = arith.constant 0 : index
    %c0_7 = arith.constant 0 : index
    %4 = vector.load %arg4[%c0_6, %c0_7] : memref<24x128xf32, #tpu.memory_space<vmem>>, vector<1x96xf32>
    %5 = vector.broadcast %4 : vector<1x96xf32> to vector<16x96xf32>
    %6 = arith.addf %3, %5 : vector<16x96xf32>
    %7 = vector.extract_strided_slice %6 {offsets = [0, 0], sizes = [16, 8], strides = [1, 1]} : vector<16x96xf32> to vector<16x8xf32>
    %8 = vector.shape_cast %7 : vector<16x8xf32> to vector<2x8x8xf32>
    %9 = vector.extract_strided_slice %6 {offsets = [0, 8], sizes = [16, 8], strides = [1, 1]} : vector<16x96xf32> to vector<16x8xf32>
    %10 = vector.shape_cast %9 : vector<16x8xf32> to vector<2x8x8xf32>
    %11 = vector.extract_strided_slice %6 {offsets = [0, 16], sizes = [16, 8], strides = [1, 1]} : vector<16x96xf32> to vector<16x8xf32>
    %12 = vector.shape_cast %11 : vector<16x8xf32> to vector<2x8x8xf32>
    %13 = vector.extract_strided_slice %6 {offsets = [0, 24], sizes = [16, 8], strides = [1, 1]} : vector<16x96xf32> to vector<16x8xf32>
    %14 = vector.shape_cast %13 : vector<16x8xf32> to vector<2x8x8xf32>
    %15 = tpu.concatenate %8, %10, %12, %14 in 0 : vector<2x8x8xf32>, vector<2x8x8xf32>, vector<2x8x8xf32>, vector<2x8x8xf32> -> vector<8x8x8xf32>
    %16 = vector.extract_strided_slice %6 {offsets = [0, 32], sizes = [16, 8], strides = [1, 1]} : vector<16x96xf32> to vector<16x8xf32>
    %17 = vector.shape_cast %16 : vector<16x8xf32> to vector<2x8x8xf32>
    %18 = vector.extract_strided_slice %6 {offsets = [0, 40], sizes = [16, 8], strides = [1, 1]} : vector<16x96xf32> to vector<16x8xf32>
    %19 = vector.shape_cast %18 : vector<16x8xf32> to vector<2x8x8xf32>
    %20 = vector.extract_strided_slice %6 {offsets = [0, 48], sizes = [16, 8], strides = [1, 1]} : vector<16x96xf32> to vector<16x8xf32>
    %21 = vector.shape_cast %20 : vector<16x8xf32> to vector<2x8x8xf32>
    %22 = vector.extract_strided_slice %6 {offsets = [0, 56], sizes = [16, 8], strides = [1, 1]} : vector<16x96xf32> to vector<16x8xf32>
    %23 = vector.shape_cast %22 : vector<16x8xf32> to vector<2x8x8xf32>
    %24 = tpu.concatenate %17, %19, %21, %23 in 0 : vector<2x8x8xf32>, vector<2x8x8xf32>, vector<2x8x8xf32>, vector<2x8x8xf32> -> vector<8x8x8xf32>
    %25 = vector.extract_strided_slice %6 {offsets = [0, 64], sizes = [16, 8], strides = [1, 1]} : vector<16x96xf32> to vector<16x8xf32>
    %26 = vector.shape_cast %25 : vector<16x8xf32> to vector<2x8x8xf32>
    %27 = vector.extract_strided_slice %6 {offsets = [0, 72], sizes = [16, 8], strides = [1, 1]} : vector<16x96xf32> to vector<16x8xf32>
    %28 = vector.shape_cast %27 : vector<16x8xf32> to vector<2x8x8xf32>
    %29 = vector.extract_strided_slice %6 {offsets = [0, 80], sizes = [16, 8], strides = [1, 1]} : vector<16x96xf32> to vector<16x8xf32>
    %30 = vector.shape_cast %29 : vector<16x8xf32> to vector<2x8x8xf32>
    %31 = vector.extract_strided_slice %6 {offsets = [0, 88], sizes = [16, 8], strides = [1, 1]} : vector<16x96xf32> to vector<16x8xf32>
    %32 = vector.shape_cast %31 : vector<16x8xf32> to vector<2x8x8xf32>
    %33 = tpu.concatenate %26, %28, %30, %32 in 0 : vector<2x8x8xf32>, vector<2x8x8xf32>, vector<2x8x8xf32>, vector<2x8x8xf32> -> vector<8x8x8xf32>
    "tpu.trace_start"() <{level = 10 : i32, message = "nqd,nkd->nqk"}> : () -> ()
    %cst_8 = arith.constant dense<0.000000e+00> : vector<8x8x8xf32>
    %34 = tpu.matmul %15, %24, %cst_8 {dimension_numbers = #tpu.dot_dimension_numbers<[2], [2], [1], [1], [0, 0, 0, 1, 1, 1], [0], [0]>} : vector<8x8x8xf32>, vector<8x8x8xf32>, vector<8x8x8xf32> -> vector<8x8x8xf32>
    "tpu.trace_stop"() : () -> ()
    %35 = vector.broadcast %1 : vector<8x1x8xf32> to vector<8x8x8xf32>
    %36 = arith.addf %34, %35 : vector<8x8x8xf32>
    %cst_9 = arith.constant dense<0xFF800000> : vector<8x8xf32>
    %37 = vector.multi_reduction <maximumf>, %36, %cst_9 [2] : vector<8x8x8xf32> to vector<8x8xf32>
    %38 = vector.shape_cast %37 : vector<8x8xf32> to vector<8x8x1xf32>
    %39 = vector.broadcast %38 : vector<8x8x1xf32> to vector<8x8x8xf32>
    %40 = arith.subf %36, %39 : vector<8x8x8xf32>
    %41 = math.exp %40 : vector<8x8x8xf32>
    %cst_10 = arith.constant dense<0.000000e+00> : vector<8x8xf32>
    %42 = vector.multi_reduction <add>, %41, %cst_10 [2] : vector<8x8x8xf32> to vector<8x8xf32>
    %43 = vector.shape_cast %42 : vector<8x8xf32> to vector<8x8x1xf32>
    %44 = tpu.reciprocal %43 : vector<8x8x1xf32> -> vector<8x8x1xf32>
    %45 = vector.broadcast %44 : vector<8x8x1xf32> to vector<8x8x8xf32>
    %46 = arith.mulf %41, %45 : vector<8x8x8xf32>
    "tpu.trace_start"() <{level = 10 : i32, message = "nqk,nkd->nqd"}> : () -> ()
    %cst_11 = arith.constant dense<0.000000e+00> : vector<8x8x8xf32>
    %47 = tpu.matmul %46, %33, %cst_11 {dimension_numbers = #tpu.dot_dimension_numbers<[2], [1], [1], [2], [0, 0, 0, 1, 1, 2], [0], [0]>} : vector<8x8x8xf32>, vector<8x8x8xf32>, vector<8x8x8xf32> -> vector<8x8x8xf32>
    "tpu.trace_stop"() : () -> ()
    %48 = vector.shape_cast %47 : vector<8x8x8xf32> to vector<4x16x8xf32>
    %c32 = arith.constant 32 : index
    %c0_12 = arith.constant 0 : index
    %49 = vector.load %arg3[%c32, %c0_12] : memref<624x128xf32, #tpu.memory_space<vmem>>, vector<32x32xf32>
    %50 = vector.shape_cast %49 : vector<32x32xf32> to vector<4x8x32xf32>
    "tpu.trace_start"() <{level = 10 : i32, message = "hnd,hde->hne"}> : () -> ()
    %cst_13 = arith.constant dense<0.000000e+00> : vector<4x16x32xf32>
    %51 = tpu.matmul %48, %50, %cst_13 {dimension_numbers = #tpu.dot_dimension_numbers<[2], [1], [1], [2], [0, 0, 0, 1, 1, 2], [0], [0]>} : vector<4x16x8xf32>, vector<4x8x32xf32>, vector<4x16x32xf32> -> vector<4x16x32xf32>
    "tpu.trace_stop"() : () -> ()
    %cst_14 = arith.constant dense<0.000000e+00> : vector<16x32xf32>
    %52 = vector.multi_reduction <add>, %51, %cst_14 [0] : vector<4x16x32xf32> to vector<16x32xf32>
    %c1 = arith.constant 1 : index
    %c0_15 = arith.constant 0 : index
    %53 = vector.load %arg4[%c1, %c0_15] : memref<24x128xf32, #tpu.memory_space<vmem>>, vector<1x32xf32>
    %54 = vector.broadcast %53 : vector<1x32xf32> to vector<16x32xf32>
    %55 = arith.addf %52, %54 : vector<16x32xf32>
    %56 = arith.addf %0, %55 : vector<16x32xf32>
    %c2 = arith.constant 2 : index
    %c0_16 = arith.constant 0 : index
    %57 = vector.load %arg4[%c2, %c0_16] : memref<24x128xf32, #tpu.memory_space<vmem>>, vector<1x32xf32>
    %c3 = arith.constant 3 : index
    %c0_17 = arith.constant 0 : index
    %58 = vector.load %arg4[%c3, %c0_17] : memref<24x128xf32, #tpu.memory_space<vmem>>, vector<1x32xf32>
    %cst_18 = arith.constant dense<0.000000e+00> : vector<16xf32>
    %59 = vector.multi_reduction <add>, %56, %cst_18 [1] : vector<16x32xf32> to vector<16xf32>
    %60 = vector.shape_cast %59 : vector<16xf32> to vector<16x1xf32>
    %cst_19 = arith.constant 3.200000e+01 : f32
    %61 = vector.broadcast %cst_19 : f32 to vector<16x1xf32>
    %62 = arith.divf %60, %61 : vector<16x1xf32>
    %63 = vector.broadcast %62 : vector<16x1xf32> to vector<16x32xf32>
    %64 = arith.subf %56, %63 : vector<16x32xf32>
    %65 = arith.mulf %64, %64 : vector<16x32xf32>
    %cst_20 = arith.constant dense<0.000000e+00> : vector<16xf32>
    %66 = vector.multi_reduction <add>, %65, %cst_20 [1] : vector<16x32xf32> to vector<16xf32>
    %67 = vector.shape_cast %66 : vector<16xf32> to vector<16x1xf32>
    %cst_21 = arith.constant 3.200000e+01 : f32
    %68 = vector.broadcast %cst_21 : f32 to vector<16x1xf32>
    %69 = arith.divf %67, %68 : vector<16x1xf32>
    %cst_22 = arith.constant 9.99999974E-6 : f32
    %70 = vector.broadcast %cst_22 : f32 to vector<16x1xf32>
    %71 = arith.addf %69, %70 : vector<16x1xf32>
    %72 = math.rsqrt %71 : vector<16x1xf32>
    %73 = vector.broadcast %72 : vector<16x1xf32> to vector<16x32xf32>
    %74 = arith.mulf %64, %73 : vector<16x32xf32>
    %75 = vector.broadcast %57 : vector<1x32xf32> to vector<16x32xf32>
    %76 = arith.mulf %74, %75 : vector<16x32xf32>
    %77 = vector.broadcast %58 : vector<1x32xf32> to vector<16x32xf32>
    %78 = arith.addf %76, %77 : vector<16x32xf32>
    %c64 = arith.constant 64 : index
    %c0_23 = arith.constant 0 : index
    %79 = vector.load %arg3[%c64, %c0_23] : memref<624x128xf32, #tpu.memory_space<vmem>>, vector<32x64xf32>
    %cst_24 = arith.constant dense<0.000000e+00> : vector<16x64xf32>
    %80 = tpu.matmul %78, %79, %cst_24 {dimension_numbers = #tpu.dot_dimension_numbers<[1], [0], [0], [1], [0, 0, 1, 1], [], []>} : vector<16x32xf32>, vector<32x64xf32>, vector<16x64xf32> -> vector<16x64xf32>
    %c4 = arith.constant 4 : index
    %c0_25 = arith.constant 0 : index
    %81 = vector.load %arg4[%c4, %c0_25] : memref<24x128xf32, #tpu.memory_space<vmem>>, vector<1x64xf32>
    %82 = vector.broadcast %81 : vector<1x64xf32> to vector<16x64xf32>
    %83 = arith.addf %80, %82 : vector<16x64xf32>
    %cst_26 = arith.constant 0.000000e+00 : f32
    %84 = vector.broadcast %cst_26 : f32 to vector<16x64xf32>
    %85 = arith.maximumf %83, %84 : vector<16x64xf32>
    %c96 = arith.constant 96 : index
    %c0_27 = arith.constant 0 : index
    %86 = vector.load %arg3[%c96, %c0_27] : memref<624x128xf32, #tpu.memory_space<vmem>>, vector<64x32xf32>
    %cst_28 = arith.constant dense<0.000000e+00> : vector<16x32xf32>
    %87 = tpu.matmul %85, %86, %cst_28 {dimension_numbers = #tpu.dot_dimension_numbers<[1], [0], [0], [1], [0, 0, 1, 1], [], []>} : vector<16x64xf32>, vector<64x32xf32>, vector<16x32xf32> -> vector<16x32xf32>
    %c5 = arith.constant 5 : index
    %c0_29 = arith.constant 0 : index
    %88 = vector.load %arg4[%c5, %c0_29] : memref<24x128xf32, #tpu.memory_space<vmem>>, vector<1x32xf32>
    %89 = vector.broadcast %88 : vector<1x32xf32> to vector<16x32xf32>
    %90 = arith.addf %87, %89 : vector<16x32xf32>
    %91 = arith.addf %78, %90 : vector<16x32xf32>
    %c6 = arith.constant 6 : index
    %c0_30 = arith.constant 0 : index
    %92 = vector.load %arg4[%c6, %c0_30] : memref<24x128xf32, #tpu.memory_space<vmem>>, vector<1x32xf32>
    %c7 = arith.constant 7 : index
    %c0_31 = arith.constant 0 : index
    %93 = vector.load %arg4[%c7, %c0_31] : memref<24x128xf32, #tpu.memory_space<vmem>>, vector<1x32xf32>
    %cst_32 = arith.constant dense<0.000000e+00> : vector<16xf32>
    %94 = vector.multi_reduction <add>, %91, %cst_32 [1] : vector<16x32xf32> to vector<16xf32>
    %95 = vector.shape_cast %94 : vector<16xf32> to vector<16x1xf32>
    %cst_33 = arith.constant 3.200000e+01 : f32
    %96 = vector.broadcast %cst_33 : f32 to vector<16x1xf32>
    %97 = arith.divf %95, %96 : vector<16x1xf32>
    %98 = vector.broadcast %97 : vector<16x1xf32> to vector<16x32xf32>
    %99 = arith.subf %91, %98 : vector<16x32xf32>
    %100 = arith.mulf %99, %99 : vector<16x32xf32>
    %cst_34 = arith.constant dense<0.000000e+00> : vector<16xf32>
    %101 = vector.multi_reduction <add>, %100, %cst_34 [1] : vector<16x32xf32> to vector<16xf32>
    %102 = vector.shape_cast %101 : vector<16xf32> to vector<16x1xf32>
    %cst_35 = arith.constant 3.200000e+01 : f32
    %103 = vector.broadcast %cst_35 : f32 to vector<16x1xf32>
    %104 = arith.divf %102, %103 : vector<16x1xf32>
    %cst_36 = arith.constant 9.99999974E-6 : f32
    %105 = vector.broadcast %cst_36 : f32 to vector<16x1xf32>
    %106 = arith.addf %104, %105 : vector<16x1xf32>
    %107 = math.rsqrt %106 : vector<16x1xf32>
    %108 = vector.broadcast %107 : vector<16x1xf32> to vector<16x32xf32>
    %109 = arith.mulf %99, %108 : vector<16x32xf32>
    %110 = vector.broadcast %92 : vector<1x32xf32> to vector<16x32xf32>
    %111 = arith.mulf %109, %110 : vector<16x32xf32>
    %112 = vector.broadcast %93 : vector<1x32xf32> to vector<16x32xf32>
    %113 = arith.addf %111, %112 : vector<16x32xf32>
    %c160 = arith.constant 160 : index
    %c0_37 = arith.constant 0 : index
    %114 = vector.load %arg3[%c160, %c0_37] : memref<624x128xf32, #tpu.memory_space<vmem>>, vector<32x96xf32>
    %cst_38 = arith.constant dense<0.000000e+00> : vector<16x96xf32>
    %115 = tpu.matmul %113, %114, %cst_38 {dimension_numbers = #tpu.dot_dimension_numbers<[1], [0], [0], [1], [0, 0, 1, 1], [], []>} : vector<16x32xf32>, vector<32x96xf32>, vector<16x96xf32> -> vector<16x96xf32>
    %c8 = arith.constant 8 : index
    %c0_39 = arith.constant 0 : index
    %116 = vector.load %arg4[%c8, %c0_39] : memref<24x128xf32, #tpu.memory_space<vmem>>, vector<1x96xf32>
    %117 = vector.broadcast %116 : vector<1x96xf32> to vector<16x96xf32>
    %118 = arith.addf %115, %117 : vector<16x96xf32>
    %119 = vector.extract_strided_slice %118 {offsets = [0, 0], sizes = [16, 8], strides = [1, 1]} : vector<16x96xf32> to vector<16x8xf32>
    %120 = vector.shape_cast %119 : vector<16x8xf32> to vector<2x8x8xf32>
    %121 = vector.extract_strided_slice %118 {offsets = [0, 8], sizes = [16, 8], strides = [1, 1]} : vector<16x96xf32> to vector<16x8xf32>
    %122 = vector.shape_cast %121 : vector<16x8xf32> to vector<2x8x8xf32>
    %123 = vector.extract_strided_slice %118 {offsets = [0, 16], sizes = [16, 8], strides = [1, 1]} : vector<16x96xf32> to vector<16x8xf32>
    %124 = vector.shape_cast %123 : vector<16x8xf32> to vector<2x8x8xf32>
    %125 = vector.extract_strided_slice %118 {offsets = [0, 24], sizes = [16, 8], strides = [1, 1]} : vector<16x96xf32> to vector<16x8xf32>
    %126 = vector.shape_cast %125 : vector<16x8xf32> to vector<2x8x8xf32>
    %127 = tpu.concatenate %120, %122, %124, %126 in 0 : vector<2x8x8xf32>, vector<2x8x8xf32>, vector<2x8x8xf32>, vector<2x8x8xf32> -> vector<8x8x8xf32>
    %128 = vector.extract_strided_slice %118 {offsets = [0, 32], sizes = [16, 8], strides = [1, 1]} : vector<16x96xf32> to vector<16x8xf32>
    %129 = vector.shape_cast %128 : vector<16x8xf32> to vector<2x8x8xf32>
    %130 = vector.extract_strided_slice %118 {offsets = [0, 40], sizes = [16, 8], strides = [1, 1]} : vector<16x96xf32> to vector<16x8xf32>
    %131 = vector.shape_cast %130 : vector<16x8xf32> to vector<2x8x8xf32>
    %132 = vector.extract_strided_slice %118 {offsets = [0, 48], sizes = [16, 8], strides = [1, 1]} : vector<16x96xf32> to vector<16x8xf32>
    %133 = vector.shape_cast %132 : vector<16x8xf32> to vector<2x8x8xf32>
    %134 = vector.extract_strided_slice %118 {offsets = [0, 56], sizes = [16, 8], strides = [1, 1]} : vector<16x96xf32> to vector<16x8xf32>
    %135 = vector.shape_cast %134 : vector<16x8xf32> to vector<2x8x8xf32>
    %136 = tpu.concatenate %129, %131, %133, %135 in 0 : vector<2x8x8xf32>, vector<2x8x8xf32>, vector<2x8x8xf32>, vector<2x8x8xf32> -> vector<8x8x8xf32>
    %137 = vector.extract_strided_slice %118 {offsets = [0, 64], sizes = [16, 8], strides = [1, 1]} : vector<16x96xf32> to vector<16x8xf32>
    %138 = vector.shape_cast %137 : vector<16x8xf32> to vector<2x8x8xf32>
    %139 = vector.extract_strided_slice %118 {offsets = [0, 72], sizes = [16, 8], strides = [1, 1]} : vector<16x96xf32> to vector<16x8xf32>
    %140 = vector.shape_cast %139 : vector<16x8xf32> to vector<2x8x8xf32>
    %141 = vector.extract_strided_slice %118 {offsets = [0, 80], sizes = [16, 8], strides = [1, 1]} : vector<16x96xf32> to vector<16x8xf32>
    %142 = vector.shape_cast %141 : vector<16x8xf32> to vector<2x8x8xf32>
    %143 = vector.extract_strided_slice %118 {offsets = [0, 88], sizes = [16, 8], strides = [1, 1]} : vector<16x96xf32> to vector<16x8xf32>
    %144 = vector.shape_cast %143 : vector<16x8xf32> to vector<2x8x8xf32>
    %145 = tpu.concatenate %138, %140, %142, %144 in 0 : vector<2x8x8xf32>, vector<2x8x8xf32>, vector<2x8x8xf32>, vector<2x8x8xf32> -> vector<8x8x8xf32>
    "tpu.trace_start"() <{level = 10 : i32, message = "nqd,nkd->nqk"}> : () -> ()
    %cst_40 = arith.constant dense<0.000000e+00> : vector<8x8x8xf32>
    %146 = tpu.matmul %127, %136, %cst_40 {dimension_numbers = #tpu.dot_dimension_numbers<[2], [2], [1], [1], [0, 0, 0, 1, 1, 1], [0], [0]>} : vector<8x8x8xf32>, vector<8x8x8xf32>, vector<8x8x8xf32> -> vector<8x8x8xf32>
    "tpu.trace_stop"() : () -> ()
    %147 = vector.broadcast %1 : vector<8x1x8xf32> to vector<8x8x8xf32>
    %148 = arith.addf %146, %147 : vector<8x8x8xf32>
    %cst_41 = arith.constant dense<0xFF800000> : vector<8x8xf32>
    %149 = vector.multi_reduction <maximumf>, %148, %cst_41 [2] : vector<8x8x8xf32> to vector<8x8xf32>
    %150 = vector.shape_cast %149 : vector<8x8xf32> to vector<8x8x1xf32>
    %151 = vector.broadcast %150 : vector<8x8x1xf32> to vector<8x8x8xf32>
    %152 = arith.subf %148, %151 : vector<8x8x8xf32>
    %153 = math.exp %152 : vector<8x8x8xf32>
    %cst_42 = arith.constant dense<0.000000e+00> : vector<8x8xf32>
    %154 = vector.multi_reduction <add>, %153, %cst_42 [2] : vector<8x8x8xf32> to vector<8x8xf32>
    %155 = vector.shape_cast %154 : vector<8x8xf32> to vector<8x8x1xf32>
    %156 = tpu.reciprocal %155 : vector<8x8x1xf32> -> vector<8x8x1xf32>
    %157 = vector.broadcast %156 : vector<8x8x1xf32> to vector<8x8x8xf32>
    %158 = arith.mulf %153, %157 : vector<8x8x8xf32>
    "tpu.trace_start"() <{level = 10 : i32, message = "nqk,nkd->nqd"}> : () -> ()
    %cst_43 = arith.constant dense<0.000000e+00> : vector<8x8x8xf32>
    %159 = tpu.matmul %158, %145, %cst_43 {dimension_numbers = #tpu.dot_dimension_numbers<[2], [1], [1], [2], [0, 0, 0, 1, 1, 2], [0], [0]>} : vector<8x8x8xf32>, vector<8x8x8xf32>, vector<8x8x8xf32> -> vector<8x8x8xf32>
    "tpu.trace_stop"() : () -> ()
    %160 = vector.shape_cast %159 : vector<8x8x8xf32> to vector<4x16x8xf32>
    %c192 = arith.constant 192 : index
    %c0_44 = arith.constant 0 : index
    %161 = vector.load %arg3[%c192, %c0_44] : memref<624x128xf32, #tpu.memory_space<vmem>>, vector<32x32xf32>
    %162 = vector.shape_cast %161 : vector<32x32xf32> to vector<4x8x32xf32>
    "tpu.trace_start"() <{level = 10 : i32, message = "hnd,hde->hne"}> : () -> ()
    %cst_45 = arith.constant dense<0.000000e+00> : vector<4x16x32xf32>
    %163 = tpu.matmul %160, %162, %cst_45 {dimension_numbers = #tpu.dot_dimension_numbers<[2], [1], [1], [2], [0, 0, 0, 1, 1, 2], [0], [0]>} : vector<4x16x8xf32>, vector<4x8x32xf32>, vector<4x16x32xf32> -> vector<4x16x32xf32>
    "tpu.trace_stop"() : () -> ()
    %cst_46 = arith.constant dense<0.000000e+00> : vector<16x32xf32>
    %164 = vector.multi_reduction <add>, %163, %cst_46 [0] : vector<4x16x32xf32> to vector<16x32xf32>
    %c9 = arith.constant 9 : index
    %c0_47 = arith.constant 0 : index
    %165 = vector.load %arg4[%c9, %c0_47] : memref<24x128xf32, #tpu.memory_space<vmem>>, vector<1x32xf32>
    %166 = vector.broadcast %165 : vector<1x32xf32> to vector<16x32xf32>
    %167 = arith.addf %164, %166 : vector<16x32xf32>
    %168 = arith.addf %113, %167 : vector<16x32xf32>
    %c10 = arith.constant 10 : index
    %c0_48 = arith.constant 0 : index
    %169 = vector.load %arg4[%c10, %c0_48] : memref<24x128xf32, #tpu.memory_space<vmem>>, vector<1x32xf32>
    %c11 = arith.constant 11 : index
    %c0_49 = arith.constant 0 : index
    %170 = vector.load %arg4[%c11, %c0_49] : memref<24x128xf32, #tpu.memory_space<vmem>>, vector<1x32xf32>
    %cst_50 = arith.constant dense<0.000000e+00> : vector<16xf32>
    %171 = vector.multi_reduction <add>, %168, %cst_50 [1] : vector<16x32xf32> to vector<16xf32>
    %172 = vector.shape_cast %171 : vector<16xf32> to vector<16x1xf32>
    %cst_51 = arith.constant 3.200000e+01 : f32
    %173 = vector.broadcast %cst_51 : f32 to vector<16x1xf32>
    %174 = arith.divf %172, %173 : vector<16x1xf32>
    %175 = vector.broadcast %174 : vector<16x1xf32> to vector<16x32xf32>
    %176 = arith.subf %168, %175 : vector<16x32xf32>
    %177 = arith.mulf %176, %176 : vector<16x32xf32>
    %cst_52 = arith.constant dense<0.000000e+00> : vector<16xf32>
    %178 = vector.multi_reduction <add>, %177, %cst_52 [1] : vector<16x32xf32> to vector<16xf32>
    %179 = vector.shape_cast %178 : vector<16xf32> to vector<16x1xf32>
    %cst_53 = arith.constant 3.200000e+01 : f32
    %180 = vector.broadcast %cst_53 : f32 to vector<16x1xf32>
    %181 = arith.divf %179, %180 : vector<16x1xf32>
    %cst_54 = arith.constant 9.99999974E-6 : f32
    %182 = vector.broadcast %cst_54 : f32 to vector<16x1xf32>
    %183 = arith.addf %181, %182 : vector<16x1xf32>
    %184 = math.rsqrt %183 : vector<16x1xf32>
    %185 = vector.broadcast %184 : vector<16x1xf32> to vector<16x32xf32>
    %186 = arith.mulf %176, %185 : vector<16x32xf32>
    %187 = vector.broadcast %169 : vector<1x32xf32> to vector<16x32xf32>
    %188 = arith.mulf %186, %187 : vector<16x32xf32>
    %189 = vector.broadcast %170 : vector<1x32xf32> to vector<16x32xf32>
    %190 = arith.addf %188, %189 : vector<16x32xf32>
    %c224 = arith.constant 224 : index
    %c0_55 = arith.constant 0 : index
    %191 = vector.load %arg3[%c224, %c0_55] : memref<624x128xf32, #tpu.memory_space<vmem>>, vector<32x64xf32>
    %cst_56 = arith.constant dense<0.000000e+00> : vector<16x64xf32>
    %192 = tpu.matmul %190, %191, %cst_56 {dimension_numbers = #tpu.dot_dimension_numbers<[1], [0], [0], [1], [0, 0, 1, 1], [], []>} : vector<16x32xf32>, vector<32x64xf32>, vector<16x64xf32> -> vector<16x64xf32>
    %c12 = arith.constant 12 : index
    %c0_57 = arith.constant 0 : index
    %193 = vector.load %arg4[%c12, %c0_57] : memref<24x128xf32, #tpu.memory_space<vmem>>, vector<1x64xf32>
    %194 = vector.broadcast %193 : vector<1x64xf32> to vector<16x64xf32>
    %195 = arith.addf %192, %194 : vector<16x64xf32>
    %cst_58 = arith.constant 0.000000e+00 : f32
    %196 = vector.broadcast %cst_58 : f32 to vector<16x64xf32>
    %197 = arith.maximumf %195, %196 : vector<16x64xf32>
    %c256 = arith.constant 256 : index
    %c0_59 = arith.constant 0 : index
    %198 = vector.load %arg3[%c256, %c0_59] : memref<624x128xf32, #tpu.memory_space<vmem>>, vector<64x32xf32>
    %cst_60 = arith.constant dense<0.000000e+00> : vector<16x32xf32>
    %199 = tpu.matmul %197, %198, %cst_60 {dimension_numbers = #tpu.dot_dimension_numbers<[1], [0], [0], [1], [0, 0, 1, 1], [], []>} : vector<16x64xf32>, vector<64x32xf32>, vector<16x32xf32> -> vector<16x32xf32>
    %c13 = arith.constant 13 : index
    %c0_61 = arith.constant 0 : index
    %200 = vector.load %arg4[%c13, %c0_61] : memref<24x128xf32, #tpu.memory_space<vmem>>, vector<1x32xf32>
    %201 = vector.broadcast %200 : vector<1x32xf32> to vector<16x32xf32>
    %202 = arith.addf %199, %201 : vector<16x32xf32>
    %203 = arith.addf %190, %202 : vector<16x32xf32>
    %c14 = arith.constant 14 : index
    %c0_62 = arith.constant 0 : index
    %204 = vector.load %arg4[%c14, %c0_62] : memref<24x128xf32, #tpu.memory_space<vmem>>, vector<1x32xf32>
    %c15 = arith.constant 15 : index
    %c0_63 = arith.constant 0 : index
    %205 = vector.load %arg4[%c15, %c0_63] : memref<24x128xf32, #tpu.memory_space<vmem>>, vector<1x32xf32>
    %cst_64 = arith.constant dense<0.000000e+00> : vector<16xf32>
    %206 = vector.multi_reduction <add>, %203, %cst_64 [1] : vector<16x32xf32> to vector<16xf32>
    %207 = vector.shape_cast %206 : vector<16xf32> to vector<16x1xf32>
    %cst_65 = arith.constant 3.200000e+01 : f32
    %208 = vector.broadcast %cst_65 : f32 to vector<16x1xf32>
    %209 = arith.divf %207, %208 : vector<16x1xf32>
    %210 = vector.broadcast %209 : vector<16x1xf32> to vector<16x32xf32>
    %211 = arith.subf %203, %210 : vector<16x32xf32>
    %212 = arith.mulf %211, %211 : vector<16x32xf32>
    %cst_66 = arith.constant dense<0.000000e+00> : vector<16xf32>
    %213 = vector.multi_reduction <add>, %212, %cst_66 [1] : vector<16x32xf32> to vector<16xf32>
    %214 = vector.shape_cast %213 : vector<16xf32> to vector<16x1xf32>
    %cst_67 = arith.constant 3.200000e+01 : f32
    %215 = vector.broadcast %cst_67 : f32 to vector<16x1xf32>
    %216 = arith.divf %214, %215 : vector<16x1xf32>
    %cst_68 = arith.constant 9.99999974E-6 : f32
    %217 = vector.broadcast %cst_68 : f32 to vector<16x1xf32>
    %218 = arith.addf %216, %217 : vector<16x1xf32>
    %219 = math.rsqrt %218 : vector<16x1xf32>
    %220 = vector.broadcast %219 : vector<16x1xf32> to vector<16x32xf32>
    %221 = arith.mulf %211, %220 : vector<16x32xf32>
    %222 = vector.broadcast %204 : vector<1x32xf32> to vector<16x32xf32>
    %223 = arith.mulf %221, %222 : vector<16x32xf32>
    %224 = vector.broadcast %205 : vector<1x32xf32> to vector<16x32xf32>
    %225 = arith.addf %223, %224 : vector<16x32xf32>
    %c0_69 = arith.constant 0 : index
    %c0_70 = arith.constant 0 : index
    %226 = vector.load %arg5[%c0_69, %c0_70] : memref<16x32xf32, #tpu.memory_space<vmem>>, vector<16x32xf32>
    tpu.vector_store %arg5[%c0_69, %c0_70], %225 {strides = array<i32>} : memref<16x32xf32, #tpu.memory_space<vmem>>, vector<16x32xf32>,
    %c0_71 = arith.constant 0 : index
    %c0_72 = arith.constant 0 : index
    %227 = tpu.strided_load %arg5[%c0_71, %c0_72] {strides = array<i32: 8, 1>} : memref<16x32xf32, #tpu.memory_space<vmem>>, vector<2x32xf32>
    %c0_73 = arith.constant 0 : index
    %c0_74 = arith.constant 0 : index
    %228 = vector.load %arg2[%c0_73, %c0_74] : memref<2x16xf32, #tpu.memory_space<vmem>>, vector<2x16xf32>
    %c320 = arith.constant 320 : index
    %c0_75 = arith.constant 0 : index
    %229 = vector.load %arg3[%c320, %c0_75] : memref<624x128xf32, #tpu.memory_space<vmem>>, vector<16x128xf32>
    %cst_76 = arith.constant dense<0.000000e+00> : vector<2x128xf32>
    %230 = tpu.matmul %228, %229, %cst_76 {dimension_numbers = #tpu.dot_dimension_numbers<[1], [0], [0], [1], [0, 0, 1, 1], [], []>} : vector<2x16xf32>, vector<16x128xf32>, vector<2x128xf32> -> vector<2x128xf32>
    %c336 = arith.constant 336 : index
    %c0_77 = arith.constant 0 : index
    %231 = vector.load %arg3[%c336, %c0_77] : memref<624x128xf32, #tpu.memory_space<vmem>>, vector<32x128xf32>
    %cst_78 = arith.constant dense<0.000000e+00> : vector<2x128xf32>
    %232 = tpu.matmul %227, %231, %cst_78 {dimension_numbers = #tpu.dot_dimension_numbers<[1], [0], [0], [1], [0, 0, 1, 1], [], []>} : vector<2x32xf32>, vector<32x128xf32>, vector<2x128xf32> -> vector<2x128xf32>
    %233 = arith.addf %230, %232 : vector<2x128xf32>
    %c16 = arith.constant 16 : index
    %c0_79 = arith.constant 0 : index
    %234 = vector.load %arg4[%c16, %c0_79] : memref<24x128xf32, #tpu.memory_space<vmem>>, vector<1x128xf32>
    %235 = vector.broadcast %234 : vector<1x128xf32> to vector<2x128xf32>
    %236 = arith.addf %233, %235 : vector<2x128xf32>
    %cst_80 = arith.constant 0.000000e+00 : f32
    %237 = vector.broadcast %cst_80 : f32 to vector<2x128xf32>
    %238 = arith.maximumf %236, %237 : vector<2x128xf32>
    %c368 = arith.constant 368 : index
    %c0_81 = arith.constant 0 : index
    %239 = vector.load %arg3[%c368, %c0_81] : memref<624x128xf32, #tpu.memory_space<vmem>>, vector<128x128xf32>
    %cst_82 = arith.constant dense<0.000000e+00> : vector<2x128xf32>
    %240 = tpu.matmul %238, %239, %cst_82 {dimension_numbers = #tpu.dot_dimension_numbers<[1], [0], [0], [1], [0, 0, 1, 1], [], []>} : vector<2x128xf32>, vector<128x128xf32>, vector<2x128xf32> -> vector<2x128xf32>
    %c17 = arith.constant 17 : index
    %c0_83 = arith.constant 0 : index
    %241 = vector.load %arg4[%c17, %c0_83] : memref<24x128xf32, #tpu.memory_space<vmem>>, vector<1x128xf32>
    %242 = vector.broadcast %241 : vector<1x128xf32> to vector<2x128xf32>
    %243 = arith.addf %240, %242 : vector<2x128xf32>
    %cst_84 = arith.constant 0.000000e+00 : f32
    %244 = vector.broadcast %cst_84 : f32 to vector<2x128xf32>
    %245 = arith.maximumf %243, %244 : vector<2x128xf32>
    %c496 = arith.constant 496 : index
    %c0_85 = arith.constant 0 : index
    %246 = vector.load %arg3[%c496, %c0_85] : memref<624x128xf32, #tpu.memory_space<vmem>>, vector<128x128xf32>
    %cst_86 = arith.constant dense<0.000000e+00> : vector<2x128xf32>
    %247 = tpu.matmul %245, %246, %cst_86 {dimension_numbers = #tpu.dot_dimension_numbers<[1], [0], [0], [1], [0, 0, 1, 1], [], []>} : vector<2x128xf32>, vector<128x128xf32>, vector<2x128xf32> -> vector<2x128xf32>
    %c18 = arith.constant 18 : index
    %c0_87 = arith.constant 0 : index
    %248 = vector.load %arg4[%c18, %c0_87] : memref<24x128xf32, #tpu.memory_space<vmem>>, vector<1x128xf32>
    %249 = vector.broadcast %248 : vector<1x128xf32> to vector<2x128xf32>
    %250 = arith.addf %247, %249 : vector<2x128xf32>
    %c0_88 = arith.constant 0 : index
    %c0_89 = arith.constant 0 : index
    %251 = vector.load %arg6[%c0_88, %c0_89] : memref<2x128xf32, #tpu.memory_space<vmem>>, vector<2x128xf32>
    tpu.vector_store %arg6[%c0_88, %c0_89], %250 {strides = array<i32>} : memref<2x128xf32, #tpu.memory_space<vmem>>, vector<2x128xf32>,
    return
  }
}

</mosaic_0001>

<llo_original>
// kernel: transformer_forward.1
$region0: #{transformer_forward.1}
  #allocation0 [shape = 'u32[]', space=smem, size = 0x4, offset = 0x4, fixed_abs, tag = 'smem constant byte address 0x4 - core index']
  #allocation1 [shape = 'u32[72,128]{1,0:T(1,128)}', space=vmem, size = 0x9000, scoped, tag = 'internal scratch']
  %s0 = inlined_call_operand.vmem [shape: f32[16,32], index: 0, kind: input, shape index: {}]
  %s1 = inlined_call_operand.vmem [shape: f32[8,1,8], index: 1, kind: input, shape index: {}]
  %s2 = inlined_call_operand.vmem [shape: f32[2,16], index: 2, kind: input, shape index: {}]
  %s3 = inlined_call_operand.hbm [shape: f32[624,128], index: 3, kind: input, shape index: {}]
  %s4 = inlined_call_operand.vmem [shape: f32[24,128], index: 4, kind: input, shape index: {}]
  %s5 = inlined_call_operand.hbm [shape: f32[16,32], index: 5, kind: output, shape index: {0}]
  %s6 = inlined_call_operand.vmem [shape: f32[2,128], index: 6, kind: output, shape index: {1}]
  %7 = xla_tuple %s5, %s6
  %s8 = sld [smem:[#allocation0]]
  $region42: #{transformer_forward.1} parent=0
    _
  %s10 = ssub.s32 1, %s8
  %s11 = scalar_select 0, %s10, %s8
  $region1: #{transformer_forward.1} parent=0
    #allocation2 [shape = 'u8[319488]{0}', space=vmem, size = 0x4e000, scoped, tag = 'input window, operand 3, single buffered']
    #allocation3 [shape = 's32[1]{0}', space=sflag, size = 0x4, scoped, tag = 'scoped memory for transformer_forward.1']
    #allocation4 [shape = 's32[1]{0}', space=sflag, size = 0x4, scoped, tag = 'scoped memory for transformer_forward.1']
    #allocation5 [shape = 'u8[8192]{0}', space=vmem, size = 0x2000, scoped, tag = 'output window, operand 0, single buffered']
    %12 = vsyncpa [#allocation3], 0
    %13 = vsyncpa [#allocation4], 0
    // Predicated region
    $region2: #{transformer_forward.1} parent=1 // pred_check
      _
    $region3: #{transformer_forward.1} parent=1 // pred_check_branch
      %15 = sbr.rel (0) target = $region5
    $region4: #{transformer_forward.1} parent=1 // pred_region
      _
    $region5: #{transformer_forward.1} parent=1 // pred_fallthru
      _
    // Predicated region
    $region6: #{transformer_forward.1} parent=1 // pred_check
      _
    $region7: #{transformer_forward.1} parent=1 // pred_check_branch
      %17 = sbr.rel (0) target = $region9
    $region8: #{transformer_forward.1} parent=1 // pred_region
      _
    $region9: #{transformer_forward.1} parent=1 // pred_fallthru
      _
    // Predicated region
    $region10: #{transformer_forward.1} parent=1 // pred_check
      _
    $region11: #{transformer_forward.1} parent=1 // pred_check_branch
      %19 = sbr.rel (0) target = $region13
    $region12: #{transformer_forward.1} parent=1 // pred_region
      _
    $region13: #{transformer_forward.1} parent=1 // pred_fallthru
      _
    // Predicated region
    $region14: #{transformer_forward.1} parent=1 // pred_check
      _
    $region15: #{transformer_forward.1} parent=1 // pred_check_branch
      %21 = sbr.rel (0) target = $region17
    $region16: #{transformer_forward.1} parent=1 // pred_region
      %23 = vsyncadd [#allocation3], 0
      %s24 = sshll.u32 %s3, 4
      %s25 = int_to_ptr.hbm [resolvable:$true] %s24
      %s26 = sshll.u32 [#allocation2], 4
      %s27 = int_to_ptr.vmem [resolvable:$true] %s26
      %32 = dma.hbm_to_vmem [thread:$0]  %s25, 9984, %s27, [#allocation3], 128, 128, 8
    $region17: #{transformer_forward.1} parent=1 // pred_fallthru
      _
    // Predicated region
    $region18: #{transformer_forward.1} parent=1 // pred_check
      _
    $region19: #{transformer_forward.1} parent=1 // pred_check_branch
      %34 = sbr.rel (0) target = $region21
    $region20: #{transformer_forward.1} parent=1 // pred_region
      _
    $region21: #{transformer_forward.1} parent=1 // pred_fallthru
      _
    // Predicated region
    $region22: #{transformer_forward.1} parent=1 // pred_check
      _
    $region23: #{transformer_forward.1} parent=1 // pred_check_branch
      %36 = sbr.rel (0) target = $region25
    $region24: #{transformer_forward.1} parent=1 // pred_region
      %38 = dma.done [#allocation3], 9984
    $region25: #{transformer_forward.1} parent=1 // pred_fallthru
      _
    %v39 = vld [vmem:[%s0] sm:$0xff]
    %v40 = vld [vmem:[%s0 + $0x8] sm:$0xff]
    %v41 = vld [vmem:[%s1] sm:$0x1]
    %v42 = vld [vmem:[%s1 + $0x1] sm:$0x1]
    %v43 = vld [vmem:[%s1 + $0x2] sm:$0x1]
    %v44 = vld [vmem:[%s1 + $0x3] sm:$0x1]
    %v45 = vld [vmem:[%s1 + $0x4] sm:$0x1]
    %v46 = vld [vmem:[%s1 + $0x5] sm:$0x1]
    %v47 = vld [vmem:[%s1 + $0x6] sm:$0x1]
    %v48 = vld [vmem:[%s1 + $0x7] sm:$0x1]
    %v49 = vld [vmem:[#allocation2] sm:$0xff]
    %v50 = vld [vmem:[#allocation2 + $0x8] sm:$0xff]
    %v51 = vld [vmem:[#allocation2 + $0x10] sm:$0xff]
    %v52 = vld [vmem:[#allocation2 + $0x18] sm:$0xff]
    %v53 = vld [vmem:[%s4] sm:$0x1]
    %v54 = vperm.slane %v53, 0
    %vm55 = vcmask 261120
    %v57 = vsel %vm55, %v39, 0
    %v60 = vsel %vm55, %v40, 0
    %62 = vmatpush.msra.mxu0 0.0
    %63 = vmatpush.msra.mxu0 0.0
    %64 = vmatpush.msra.mxu0 0.0
    %65 = vmatpush.msra.mxu0 0.0
    %66 = vmatpush.msra.mxu0 0.0
    %67 = vmatpush.msra.mxu0 0.0
    %68 = vmatpush.msra.mxu0 0.0
    %69 = vmatpush.msra.mxu0 0.0
    %70 = vmatpush.msra.mxu0 0.0
    %71 = vmatpush.msra.mxu0 0.0
    %72 = vmatpush.msra.mxu0 0.0
    %73 = vmatpush.msra.mxu0 0.0
    %74 = vmatpush.msra.mxu0 %v52
    %75 = vmatpush.msra.mxu0 %v51
    %76 = vmatpush.msra.mxu0 %v50
    %77 = vmatpush.msra.mxu0 %v49
    %78 = vmatmul.f32.gmra.mxu0 %v57
    %v79 = vpop.f32.mrf.mxu0
    %v80 = vadd.f32 %v54, %v79
    %81 = vmatmul.f32.gmra.mxu0 %v60
    %v82 = vpop.f32.mrf.mxu0
    %v83 = vadd.f32 %v54, %v82
    %84 = vdwg.mxu0
    %87 = vrot.lane.b32.xlu0 %v80, 120
    %v88 = vpop.permute.xlu0 %87
    %89 = vrot.lane.b32.xlu0 %v83, 120
    %v90 = vpop.permute.xlu0 %89
    %91 = vrot.lane.b32.xlu0 %v80, 112
    %v92 = vpop.permute.xlu0 %91
    %93 = vrot.lane.b32.xlu0 %v83, 112
    %v94 = vpop.permute.xlu0 %93
    %95 = vrot.lane.b32.xlu0 %v80, 104
    %v96 = vpop.permute.xlu0 %95
    %97 = vrot.lane.b32.xlu0 %v83, 104
    %v98 = vpop.permute.xlu0 %97
    %v107 = vperm.slane %v41, 0
    %v108 = vperm.slane %v42, 0
    %v109 = vperm.slane %v43, 0
    %v110 = vperm.slane %v44, 0
    %v111 = vperm.slane %v45, 0
    %v112 = vperm.slane %v46, 0
    %v113 = vperm.slane %v47, 0
    %v114 = vperm.slane %v48, 0
    %123 = vrot.lane.b32.xlu0 %v80, 96
    %v124 = vpop.permute.xlu0 %123
    %vm125 = vcmask 64512
    %v126 = vsel %vm125, %v80, 0
    %v128 = vsel %vm125, %v124, 0
    %130 = vmatpush.xpose.msra.mxu0 0.0
    %131 = vmatpush.xpose.msra.mxu0 0.0
    %132 = vmatpush.xpose.msra.mxu0 0.0
    %133 = vmatpush.xpose.msra.mxu0 0.0
    %134 = vmatpush.xpose.msra.mxu0 0.0
    %135 = vmatpush.xpose.msra.mxu0 0.0
    %136 = vmatpush.xpose.msra.mxu0 0.0
    %137 = vmatpush.xpose.msra.mxu0 0.0
    %138 = vmatpush.xpose.msra.mxu0 0.0
    %139 = vmatpush.xpose.msra.mxu0 0.0
    %140 = vmatpush.xpose.msra.mxu0 0.0
    %141 = vmatpush.xpose.msra.mxu0 0.0
    %142 = vmatpush.xpose.msra.mxu0 0.0
    %143 = vmatpush.xpose.msra.mxu0 0.0
    %144 = vmatpush.xpose.msra.mxu0 0.0
    %145 = vmatpush.xpose.msra.mxu0 %v128
    %146 = vmatmul.f32.gmra.mxu0 %v126
    %v147 = vpop.f32.mrf.mxu0
    %v148 = vadd.f32 %v107, %v147
    %149 = vdwg.mxu0
    %150 = vrot.lane.b32.xlu0 %v83, 96
    %v151 = vpop.permute.xlu0 %150
    %v152 = vsel %vm125, %v83, 0
    %v154 = vsel %vm125, %v151, 0
    %156 = vmatpush.xpose.msra.mxu0 0.0
    %157 = vmatpush.xpose.msra.mxu0 0.0
    %158 = vmatpush.xpose.msra.mxu0 0.0
    %159 = vmatpush.xpose.msra.mxu0 0.0
    %160 = vmatpush.xpose.msra.mxu0 0.0
    %161 = vmatpush.xpose.msra.mxu0 0.0
    %162 = vmatpush.xpose.msra.mxu0 0.0
    %163 = vmatpush.xpose.msra.mxu0 0.0
    %164 = vmatpush.xpose.msra.mxu0 0.0
    %165 = vmatpush.xpose.msra.mxu0 0.0
    %166 = vmatpush.xpose.msra.mxu0 0.0
    %167 = vmatpush.xpose.msra.mxu0 0.0
    %168 = vmatpush.xpose.msra.mxu0 0.0
    %169 = vmatpush.xpose.msra.mxu0 0.0
    %170 = vmatpush.xpose.msra.mxu0 0.0
    %171 = vmatpush.xpose.msra.mxu0 %v154
    %172 = vmatmul.f32.gmra.mxu0 %v152
    %v173 = vpop.f32.mrf.mxu0
    %v174 = vadd.f32 %v108, %v173
    %175 = vdwg.mxu0
    %176 = vrot.lane.b32.xlu0 %v88, 96
    %v177 = vpop.permute.xlu0 %176
    %v178 = vsel %vm125, %v88, 0
    %v180 = vsel %vm125, %v177, 0
    %182 = vmatpush.xpose.msra.mxu0 0.0
    %183 = vmatpush.xpose.msra.mxu0 0.0
    %184 = vmatpush.xpose.msra.mxu0 0.0
    %185 = vmatpush.xpose.msra.mxu0 0.0
    %186 = vmatpush.xpose.msra.mxu0 0.0
    %187 = vmatpush.xpose.msra.mxu0 0.0
    %188 = vmatpush.xpose.msra.mxu0 0.0
    %189 = vmatpush.xpose.msra.mxu0 0.0
    %190 = vmatpush.xpose.msra.mxu0 0.0
    %191 = vmatpush.xpose.msra.mxu0 0.0
    %192 = vmatpush.xpose.msra.mxu0 0.0
    %193 = vmatpush.xpose.msra.mxu0 0.0
    %194 = vmatpush.xpose.msra.mxu0 0.0
    %195 = vmatpush.xpose.msra.mxu0 0.0
    %196 = vmatpush.xpose.msra.mxu0 0.0
    %197 = vmatpush.xpose.msra.mxu0 %v180
    %198 = vmatmul.f32.gmra.mxu0 %v178
    %v199 = vpop.f32.mrf.mxu0
    %v200 = vadd.f32 %v109, %v199
    %201 = vdwg.mxu0
    %202 = vrot.lane.b32.xlu0 %v90, 96
    %v203 = vpop.permute.xlu0 %202
    %v204 = vsel %vm125, %v90, 0
    %v206 = vsel %vm125, %v203, 0
    %208 = vmatpush.xpose.msra.mxu0 0.0
    %209 = vmatpush.xpose.msra.mxu0 0.0
    %210 = vmatpush.xpose.msra.mxu0 0.0
    %211 = vmatpush.xpose.msra.mxu0 0.0
    %212 = vmatpush.xpose.msra.mxu0 0.0
    %213 = vmatpush.xpose.msra.mxu0 0.0
    %214 = vmatpush.xpose.msra.mxu0 0.0
    %215 = vmatpush.xpose.msra.mxu0 0.0
    %216 = vmatpush.xpose.msra.mxu0 0.0
    %217 = vmatpush.xpose.msra.mxu0 0.0
    %218 = vmatpush.xpose.msra.mxu0 0.0
    %219 = vmatpush.xpose.msra.mxu0 0.0
    %220 = vmatpush.xpose.msra.mxu0 0.0
    %221 = vmatpush.xpose.msra.mxu0 0.0
    %222 = vmatpush.xpose.msra.mxu0 0.0
    %223 = vmatpush.xpose.msra.mxu0 %v206
    %224 = vmatmul.f32.gmra.mxu0 %v204
    %v225 = vpop.f32.mrf.mxu0
    %v226 = vadd.f32 %v110, %v225
    %227 = vdwg.mxu0
    %228 = vrot.lane.b32.xlu0 %v92, 96
    %v229 = vpop.permute.xlu0 %228
    %v230 = vsel %vm125, %v92, 0
    %v232 = vsel %vm125, %v229, 0
    %234 = vmatpush.xpose.msra.mxu0 0.0
    %235 = vmatpush.xpose.msra.mxu0 0.0
    %236 = vmatpush.xpose.msra.mxu0 0.0
    %237 = vmatpush.xpose.msra.mxu0 0.0
    %238 = vmatpush.xpose.msra.mxu0 0.0
    %239 = vmatpush.xpose.msra.mxu0 0.0
    %240 = vmatpush.xpose.msra.mxu0 0.0
    %241 = vmatpush.xpose.msra.mxu0 0.0
    %242 = vmatpush.xpose.msra.mxu0 0.0
    %243 = vmatpush.xpose.msra.mxu0 0.0
    %244 = vmatpush.xpose.msra.mxu0 0.0
    %245 = vmatpush.xpose.msra.mxu0 0.0
    %246 = vmatpush.xpose.msra.mxu0 0.0
    %247 = vmatpush.xpose.msra.mxu0 0.0
    %248 = vmatpush.xpose.msra.mxu0 0.0
    %249 = vmatpush.xpose.msra.mxu0 %v232
    %250 = vmatmul.f32.gmra.mxu0 %v230
    %v251 = vpop.f32.mrf.mxu0
    %v252 = vadd.f32 %v111, %v251
    %253 = vdwg.mxu0
    %254 = vrot.lane.b32.xlu0 %v94, 96
    %v255 = vpop.permute.xlu0 %254
    %v256 = vsel %vm125, %v94, 0
    %v258 = vsel %vm125, %v255, 0
    %260 = vmatpush.xpose.msra.mxu0 0.0
    %261 = vmatpush.xpose.msra.mxu0 0.0
    %262 = vmatpush.xpose.msra.mxu0 0.0
    %263 = vmatpush.xpose.msra.mxu0 0.0
    %264 = vmatpush.xpose.msra.mxu0 0.0
    %265 = vmatpush.xpose.msra.mxu0 0.0
    %266 = vmatpush.xpose.msra.mxu0 0.0
    %267 = vmatpush.xpose.msra.mxu0 0.0
    %268 = vmatpush.xpose.msra.mxu0 0.0
    %269 = vmatpush.xpose.msra.mxu0 0.0
    %270 = vmatpush.xpose.msra.mxu0 0.0
    %271 = vmatpush.xpose.msra.mxu0 0.0
    %272 = vmatpush.xpose.msra.mxu0 0.0
    %273 = vmatpush.xpose.msra.mxu0 0.0
    %274 = vmatpush.xpose.msra.mxu0 0.0
    %275 = vmatpush.xpose.msra.mxu0 %v258
    %276 = vmatmul.f32.gmra.mxu0 %v256
    %v277 = vpop.f32.mrf.mxu0
    %v278 = vadd.f32 %v112, %v277
    %279 = vdwg.mxu0
    %280 = vrot.lane.b32.xlu0 %v96, 96
    %v281 = vpop.permute.xlu0 %280
    %v282 = vsel %vm125, %v96, 0
    %v284 = vsel %vm125, %v281, 0
    %286 = vmatpush.xpose.msra.mxu0 0.0
    %287 = vmatpush.xpose.msra.mxu0 0.0
    %288 = vmatpush.xpose.msra.mxu0 0.0
    %289 = vmatpush.xpose.msra.mxu0 0.0
    %290 = vmatpush.xpose.msra.mxu0 0.0
    %291 = vmatpush.xpose.msra.mxu0 0.0
    %292 = vmatpush.xpose.msra.mxu0 0.0
    %293 = vmatpush.xpose.msra.mxu0 0.0
    %294 = vmatpush.xpose.msra.mxu0 0.0
    %295 = vmatpush.xpose.msra.mxu0 0.0
    %296 = vmatpush.xpose.msra.mxu0 0.0
    %297 = vmatpush.xpose.msra.mxu0 0.0
    %298 = vmatpush.xpose.msra.mxu0 0.0
    %299 = vmatpush.xpose.msra.mxu0 0.0
    %300 = vmatpush.xpose.msra.mxu0 0.0
    %301 = vmatpush.xpose.msra.mxu0 %v284
    %302 = vmatmul.f32.gmra.mxu0 %v282
    %v303 = vpop.f32.mrf.mxu0
    %v304 = vadd.f32 %v113, %v303
    %305 = vdwg.mxu0
    %306 = vrot.lane.b32.xlu0 %v98, 96
    %v307 = vpop.permute.xlu0 %306
    %v308 = vsel %vm125, %v98, 0
    %v310 = vsel %vm125, %v307, 0
    %312 = vmatpush.xpose.msra.mxu0 0.0
    %313 = vmatpush.xpose.msra.mxu0 0.0
    %314 = vmatpush.xpose.msra.mxu0 0.0
    %315 = vmatpush.xpose.msra.mxu0 0.0
    %316 = vmatpush.xpose.msra.mxu0 0.0
    %317 = vmatpush.xpose.msra.mxu0 0.0
    %318 = vmatpush.xpose.msra.mxu0 0.0
    %319 = vmatpush.xpose.msra.mxu0 0.0
    %320 = vmatpush.xpose.msra.mxu0 0.0
    %321 = vmatpush.xpose.msra.mxu0 0.0
    %322 = vmatpush.xpose.msra.mxu0 0.0
    %323 = vmatpush.xpose.msra.mxu0 0.0
    %324 = vmatpush.xpose.msra.mxu0 0.0
    %325 = vmatpush.xpose.msra.mxu0 0.0
    %326 = vmatpush.xpose.msra.mxu0 0.0
    %327 = vmatpush.xpose.msra.mxu0 %v310
    %328 = vmatmul.f32.gmra.mxu0 %v308
    %v329 = vpop.f32.mrf.mxu0
    %v330 = vadd.f32 %v114, %v329
    %331 = vdwg.mxu0
    %v332 = vsel %vm125, %v148, -inf
    %333 = vmax.xlane.f32.xlu0 %v332
    %v334 = vpop.xlane.xlu0 %333
    %v335 = vsel %vm125, %v174, -inf
    %336 = vmax.xlane.f32.xlu0 %v335
    %v337 = vpop.xlane.xlu0 %336
    %v338 = vsel %vm125, %v200, -inf
    %339 = vmax.xlane.f32.xlu0 %v338
    %v340 = vpop.xlane.xlu0 %339
    %v341 = vsel %vm125, %v226, -inf
    %342 = vmax.xlane.f32.xlu0 %v341
    %v343 = vpop.xlane.xlu0 %342
    %v344 = vsel %vm125, %v252, -inf
    %345 = vmax.xlane.f32.xlu0 %v344
    %v346 = vpop.xlane.xlu0 %345
    %v347 = vsel %vm125, %v278, -inf
    %348 = vmax.xlane.f32.xlu0 %v347
    %v349 = vpop.xlane.xlu0 %348
    %v350 = vsel %vm125, %v304, -inf
    %351 = vmax.xlane.f32.xlu0 %v350
    %v352 = vpop.xlane.xlu0 %351
    %v353 = vsel %vm125, %v330, -inf
    %354 = vmax.xlane.f32.xlu0 %v353
    %v355 = vpop.xlane.xlu0 %354
    %v356 = vsub.f32 %v148, %v334
    %v357 = vsub.f32 %v174, %v337
    %v358 = vsub.f32 %v200, %v340
    %v359 = vsub.f32 %v226, %v343
    %v360 = vsub.f32 %v252, %v346
    %v361 = vsub.f32 %v278, %v349
    %v362 = vsub.f32 %v304, %v352
    %v363 = vsub.f32 %v330, %v355
    %v364 = vmul.f32 %v356, 1.442695
    %v365 = vpow.pop %v364
    %v366 = vmul.f32 %v357, 1.442695
    %v367 = vpow.pop %v366
    %v368 = vmul.f32 %v358, 1.442695
    %v369 = vpow.pop %v368
    %v370 = vmul.f32 %v359, 1.442695
    %v371 = vpow.pop %v370
    %v372 = vmul.f32 %v360, 1.442695
    %v373 = vpow.pop %v372
    %v374 = vmul.f32 %v361, 1.442695
    %v375 = vpow.pop %v374
    %v376 = vmul.f32 %v362, 1.442695
    %v377 = vpow.pop %v376
    %v378 = vmul.f32 %v363, 1.442695
    %v379 = vpow.pop %v378
    %v380 = vsel %vm125, %v365, 0.0
    %381 = vadd.xlane.f32.xlu0 %v380
    %v382 = vpop.xlane.xlu0 %381
    %v383 = vsel %vm125, %v367, 0.0
    %384 = vadd.xlane.f32.xlu0 %v383
    %v385 = vpop.xlane.xlu0 %384
    %v386 = vsel %vm125, %v369, 0.0
    %387 = vadd.xlane.f32.xlu0 %v386
    %v388 = vpop.xlane.xlu0 %387
    %v389 = vsel %vm125, %v371, 0.0
    %390 = vadd.xlane.f32.xlu0 %v389
    %v391 = vpop.xlane.xlu0 %390
    %v392 = vsel %vm125, %v373, 0.0
    %393 = vadd.xlane.f32.xlu0 %v392
    %v394 = vpop.xlane.xlu0 %393
    %v395 = vsel %vm125, %v375, 0.0
    %396 = vadd.xlane.f32.xlu0 %v395
    %v397 = vpop.xlane.xlu0 %396
    %v398 = vsel %vm125, %v377, 0.0
    %399 = vadd.xlane.f32.xlu0 %v398
    %v400 = vpop.xlane.xlu0 %399
    %v401 = vsel %vm125, %v379, 0.0
    %402 = vadd.xlane.f32.xlu0 %v401
    %v403 = vpop.xlane.xlu0 %402
    %v404 = vrcp.pop %v382
    %v405 = vmul.f32 %v382, %v404
    %v406 = vsub.f32 1.0, %v405
    %v407 = vmul.f32 %v404, %v406
    %v408 = vadd.f32 %v404, %v407
    %vm409 = vweird.f32 %v382
    %vm410 = vweird.f32 %v404
    %vm411 = vmor %vm409, %vm410
    %v412 = vsel %vm411, %v404, %v408
    %v413 = vand.u32 2147483647, %v382
    %vm414 = vcmp.eq.f32.partialorder %v413, 8.507059e+37
    %v415 = vand.u32 %v382, 2147483648
    %v416 = vor.u32 1.1754944e-38, %v415
    %v417 = vsel %vm414, %v416, %v412
    %v418 = vrcp.pop %v385
    %v419 = vmul.f32 %v385, %v418
    %v420 = vsub.f32 1.0, %v419
    %v421 = vmul.f32 %v418, %v420
    %v422 = vadd.f32 %v418, %v421
    %vm423 = vweird.f32 %v385
    %vm424 = vweird.f32 %v418
    %vm425 = vmor %vm423, %vm424
    %v426 = vsel %vm425, %v418, %v422
    %v427 = vand.u32 2147483647, %v385
    %vm428 = vcmp.eq.f32.partialorder %v427, 8.507059e+37
    %v429 = vand.u32 %v385, 2147483648
    %v430 = vor.u32 1.1754944e-38, %v429
    %v431 = vsel %vm428, %v430, %v426
    %v432 = vrcp.pop %v388
    %v433 = vmul.f32 %v388, %v432
    %v434 = vsub.f32 1.0, %v433
    %v435 = vmul.f32 %v432, %v434
    %v436 = vadd.f32 %v432, %v435
    %vm437 = vweird.f32 %v388
    %vm438 = vweird.f32 %v432
    %vm439 = vmor %vm437, %vm438
    %v440 = vsel %vm439, %v432, %v436
    %v441 = vand.u32 2147483647, %v388
    %vm442 = vcmp.eq.f32.partialorder %v441, 8.507059e+37
    %v443 = vand.u32 %v388, 2147483648
    %v444 = vor.u32 1.1754944e-38, %v443
    %v445 = vsel %vm442, %v444, %v440
    %v446 = vrcp.pop %v391
    %v447 = vmul.f32 %v391, %v446
    %v448 = vsub.f32 1.0, %v447
    %v449 = vmul.f32 %v446, %v448
    %v450 = vadd.f32 %v446, %v449
    %vm451 = vweird.f32 %v391
    %vm452 = vweird.f32 %v446
    %vm453 = vmor %vm451, %vm452
    %v454 = vsel %vm453, %v446, %v450
    %v455 = vand.u32 2147483647, %v391
    %vm456 = vcmp.eq.f32.partialorder %v455, 8.507059e+37
    %v457 = vand.u32 %v391, 2147483648
    %v458 = vor.u32 1.1754944e-38, %v457
    %v459 = vsel %vm456, %v458, %v454
    %v460 = vrcp.pop %v394
    %v461 = vmul.f32 %v394, %v460
    %v462 = vsub.f32 1.0, %v461
    %v463 = vmul.f32 %v460, %v462
    %v464 = vadd.f32 %v460, %v463
    %vm465 = vweird.f32 %v394
    %vm466 = vweird.f32 %v460
    %vm467 = vmor %vm465, %vm466
    %v468 = vsel %vm467, %v460, %v464
    %v469 = vand.u32 2147483647, %v394
    %vm470 = vcmp.eq.f32.partialorder %v469, 8.507059e+37
    %v471 = vand.u32 %v394, 2147483648
    %v472 = vor.u32 1.1754944e-38, %v471
    %v473 = vsel %vm470, %v472, %v468
    %v474 = vrcp.pop %v397
    %v475 = vmul.f32 %v397, %v474
    %v476 = vsub.f32 1.0, %v475
    %v477 = vmul.f32 %v474, %v476
    %v478 = vadd.f32 %v474, %v477
    %vm479 = vweird.f32 %v397
    %vm480 = vweird.f32 %v474
    %vm481 = vmor %vm479, %vm480
    %v482 = vsel %vm481, %v474, %v478
    %v483 = vand.u32 2147483647, %v397
    %vm484 = vcmp.eq.f32.partialorder %v483, 8.507059e+37
    %v485 = vand.u32 %v397, 2147483648
    %v486 = vor.u32 1.1754944e-38, %v485
    %v487 = vsel %vm484, %v486, %v482
    %v488 = vrcp.pop %v400
    %v489 = vmul.f32 %v400, %v488
    %v490 = vsub.f32 1.0, %v489
    %v491 = vmul.f32 %v488, %v490
    %v492 = vadd.f32 %v488, %v491
    %vm493 = vweird.f32 %v400
    %vm494 = vweird.f32 %v488
    %vm495 = vmor %vm493, %vm494
    %v496 = vsel %vm495, %v488, %v492
    %v497 = vand.u32 2147483647, %v400
    %vm498 = vcmp.eq.f32.partialorder %v497, 8.507059e+37
    %v499 = vand.u32 %v400, 2147483648
    %v500 = vor.u32 1.1754944e-38, %v499
    %v501 = vsel %vm498, %v500, %v496
    %v502 = vrcp.pop %v403
    %v503 = vmul.f32 %v403, %v502
    %v504 = vsub.f32 1.0, %v503
    %v505 = vmul.f32 %v502, %v504
    %v506 = vadd.f32 %v502, %v505
    %vm507 = vweird.f32 %v403
    %vm508 = vweird.f32 %v502
    %vm509 = vmor %vm507, %vm508
    %v510 = vsel %vm509, %v502, %v506
    %v511 = vand.u32 2147483647, %v403
    %vm512 = vcmp.eq.f32.partialorder %v511, 8.507059e+37
    %v513 = vand.u32 %v403, 2147483648
    %v514 = vor.u32 1.1754944e-38, %v513
    %v515 = vsel %vm512, %v514, %v510
    %v516 = vmul.f32 %v365, %v417
    %v517 = vmul.f32 %v367, %v431
    %v518 = vmul.f32 %v369, %v445
    %v519 = vmul.f32 %v371, %v459
    %v520 = vmul.f32 %v373, %v473
    %v521 = vmul.f32 %v375, %v487
    %v522 = vmul.f32 %v377, %v501
    %v523 = vmul.f32 %v379, %v515
    %524 = vrot.lane.b32.xlu0 %v80, 64
    %v525 = vpop.permute.xlu0 %524
    %v528 = vsel %vm125, %v516, 0
    %530 = vmatpush.msra.mxu0 0.0
    %531 = vmatpush.msra.mxu0 0.0
    %532 = vmatpush.msra.mxu0 0.0
    %533 = vmatpush.msra.mxu0 0.0
    %534 = vmatpush.msra.mxu0 0.0
    %535 = vmatpush.msra.mxu0 0.0
    %536 = vmatpush.msra.mxu0 0.0
    %537 = vmatpush.msra.mxu0 0.0
    %538 = vmatpush.msra.mxu0 0.0
    %539 = vmatpush.msra.mxu0 0.0
    %540 = vmatpush.msra.mxu0 0.0
    %541 = vmatpush.msra.mxu0 0.0
    %542 = vmatpush.msra.mxu0 0.0
    %543 = vmatpush.msra.mxu0 0.0
    %544 = vmatpush.msra.mxu0 0.0
    %545 = vmatpush.msra.mxu0 %v525
    %546 = vmatmul.f32.gmra.mxu0 %v528
    %v547 = vpop.f32.mrf.mxu0
    %v548 = vadd.f32 0.0, %v547
    %549 = vdwg.mxu0
    %550 = vrot.lane.b32.xlu0 %v83, 64
    %v551 = vpop.permute.xlu0 %550
    %v554 = vsel %vm125, %v517, 0
    %556 = vmatpush.msra.mxu0 0.0
    %557 = vmatpush.msra.mxu0 0.0
    %558 = vmatpush.msra.mxu0 0.0
    %559 = vmatpush.msra.mxu0 0.0
    %560 = vmatpush.msra.mxu0 0.0
    %561 = vmatpush.msra.mxu0 0.0
    %562 = vmatpush.msra.mxu0 0.0
    %563 = vmatpush.msra.mxu0 0.0
    %564 = vmatpush.msra.mxu0 0.0
    %565 = vmatpush.msra.mxu0 0.0
    %566 = vmatpush.msra.mxu0 0.0
    %567 = vmatpush.msra.mxu0 0.0
    %568 = vmatpush.msra.mxu0 0.0
    %569 = vmatpush.msra.mxu0 0.0
    %570 = vmatpush.msra.mxu0 0.0
    %571 = vmatpush.msra.mxu0 %v551
    %572 = vmatmul.f32.gmra.mxu0 %v554
    %v573 = vpop.f32.mrf.mxu0
    %v574 = vadd.f32 0.0, %v573
    %575 = vdwg.mxu0
    %576 = vrot.lane.b32.xlu0 %v88, 64
    %v577 = vpop.permute.xlu0 %576
    %v580 = vsel %vm125, %v518, 0
    %582 = vmatpush.msra.mxu0 0.0
    %583 = vmatpush.msra.mxu0 0.0
    %584 = vmatpush.msra.mxu0 0.0
    %585 = vmatpush.msra.mxu0 0.0
    %586 = vmatpush.msra.mxu0 0.0
    %587 = vmatpush.msra.mxu0 0.0
    %588 = vmatpush.msra.mxu0 0.0
    %589 = vmatpush.msra.mxu0 0.0
    %590 = vmatpush.msra.mxu0 0.0
    %591 = vmatpush.msra.mxu0 0.0
    %592 = vmatpush.msra.mxu0 0.0
    %593 = vmatpush.msra.mxu0 0.0
    %594 = vmatpush.msra.mxu0 0.0
    %595 = vmatpush.msra.mxu0 0.0
    %596 = vmatpush.msra.mxu0 0.0
    %597 = vmatpush.msra.mxu0 %v577
    %598 = vmatmul.f32.gmra.mxu0 %v580
    %v599 = vpop.f32.mrf.mxu0
    %v600 = vadd.f32 0.0, %v599
    %601 = vdwg.mxu0
    %602 = vrot.lane.b32.xlu0 %v90, 64
    %v603 = vpop.permute.xlu0 %602
    %v606 = vsel %vm125, %v519, 0
    %608 = vmatpush.msra.mxu0 0.0
    %609 = vmatpush.msra.mxu0 0.0
    %610 = vmatpush.msra.mxu0 0.0
    %611 = vmatpush.msra.mxu0 0.0
    %612 = vmatpush.msra.mxu0 0.0
    %613 = vmatpush.msra.mxu0 0.0
    %614 = vmatpush.msra.mxu0 0.0
    %615 = vmatpush.msra.mxu0 0.0
    %616 = vmatpush.msra.mxu0 0.0
    %617 = vmatpush.msra.mxu0 0.0
    %618 = vmatpush.msra.mxu0 0.0
    %619 = vmatpush.msra.mxu0 0.0
    %620 = vmatpush.msra.mxu0 0.0
    %621 = vmatpush.msra.mxu0 0.0
    %622 = vmatpush.msra.mxu0 0.0
    %623 = vmatpush.msra.mxu0 %v603
    %624 = vmatmul.f32.gmra.mxu0 %v606
    %v625 = vpop.f32.mrf.mxu0
    %v626 = vadd.f32 0.0, %v625
    %627 = vdwg.mxu0
    %628 = vrot.lane.b32.xlu0 %v92, 64
    %v629 = vpop.permute.xlu0 %628
    %v632 = vsel %vm125, %v520, 0
    %634 = vmatpush.msra.mxu0 0.0
    %635 = vmatpush.msra.mxu0 0.0
    %636 = vmatpush.msra.mxu0 0.0
    %637 = vmatpush.msra.mxu0 0.0
    %638 = vmatpush.msra.mxu0 0.0
    %639 = vmatpush.msra.mxu0 0.0
    %640 = vmatpush.msra.mxu0 0.0
    %641 = vmatpush.msra.mxu0 0.0
    %642 = vmatpush.msra.mxu0 0.0
    %643 = vmatpush.msra.mxu0 0.0
    %644 = vmatpush.msra.mxu0 0.0
    %645 = vmatpush.msra.mxu0 0.0
    %646 = vmatpush.msra.mxu0 0.0
    %647 = vmatpush.msra.mxu0 0.0
    %648 = vmatpush.msra.mxu0 0.0
    %649 = vmatpush.msra.mxu0 %v629
    %650 = vmatmul.f32.gmra.mxu0 %v632
    %v651 = vpop.f32.mrf.mxu0
    %v652 = vadd.f32 0.0, %v651
    %653 = vdwg.mxu0
    %654 = vrot.lane.b32.xlu0 %v94, 64
    %v655 = vpop.permute.xlu0 %654
    %v658 = vsel %vm125, %v521, 0
    %660 = vmatpush.msra.mxu0 0.0
    %661 = vmatpush.msra.mxu0 0.0
    %662 = vmatpush.msra.mxu0 0.0
    %663 = vmatpush.msra.mxu0 0.0
    %664 = vmatpush.msra.mxu0 0.0
    %665 = vmatpush.msra.mxu0 0.0
    %666 = vmatpush.msra.mxu0 0.0
    %667 = vmatpush.msra.mxu0 0.0
    %668 = vmatpush.msra.mxu0 0.0
    %669 = vmatpush.msra.mxu0 0.0
    %670 = vmatpush.msra.mxu0 0.0
    %671 = vmatpush.msra.mxu0 0.0
    %672 = vmatpush.msra.mxu0 0.0
    %673 = vmatpush.msra.mxu0 0.0
    %674 = vmatpush.msra.mxu0 0.0
    %675 = vmatpush.msra.mxu0 %v655
    %676 = vmatmul.f32.gmra.mxu0 %v658
    %v677 = vpop.f32.mrf.mxu0
    %v678 = vadd.f32 0.0, %v677
    %679 = vdwg.mxu0
    %680 = vrot.lane.b32.xlu0 %v96, 64
    %v681 = vpop.permute.xlu0 %680
    %v684 = vsel %vm125, %v522, 0
    %686 = vmatpush.msra.mxu0 0.0
    %687 = vmatpush.msra.mxu0 0.0
    %688 = vmatpush.msra.mxu0 0.0
    %689 = vmatpush.msra.mxu0 0.0
    %690 = vmatpush.msra.mxu0 0.0
    %691 = vmatpush.msra.mxu0 0.0
    %692 = vmatpush.msra.mxu0 0.0
    %693 = vmatpush.msra.mxu0 0.0
    %694 = vmatpush.msra.mxu0 0.0
    %695 = vmatpush.msra.mxu0 0.0
    %696 = vmatpush.msra.mxu0 0.0
    %697 = vmatpush.msra.mxu0 0.0
    %698 = vmatpush.msra.mxu0 0.0
    %699 = vmatpush.msra.mxu0 0.0
    %700 = vmatpush.msra.mxu0 0.0
    %701 = vmatpush.msra.mxu0 %v681
    %702 = vmatmul.f32.gmra.mxu0 %v684
    %v703 = vpop.f32.mrf.mxu0
    %v704 = vadd.f32 0.0, %v703
    %705 = vdwg.mxu0
    %706 = vrot.lane.b32.xlu0 %v98, 64
    %v707 = vpop.permute.xlu0 %706
    %v710 = vsel %vm125, %v523, 0
    %712 = vmatpush.msra.mxu0 0.0
    %713 = vmatpush.msra.mxu0 0.0
    %714 = vmatpush.msra.mxu0 0.0
    %715 = vmatpush.msra.mxu0 0.0
    %716 = vmatpush.msra.mxu0 0.0
    %717 = vmatpush.msra.mxu0 0.0
    %718 = vmatpush.msra.mxu0 0.0
    %719 = vmatpush.msra.mxu0 0.0
    %720 = vmatpush.msra.mxu0 0.0
    %721 = vmatpush.msra.mxu0 0.0
    %722 = vmatpush.msra.mxu0 0.0
    %723 = vmatpush.msra.mxu0 0.0
    %724 = vmatpush.msra.mxu0 0.0
    %725 = vmatpush.msra.mxu0 0.0
    %726 = vmatpush.msra.mxu0 0.0
    %727 = vmatpush.msra.mxu0 %v707
    %728 = vmatmul.f32.gmra.mxu0 %v710
    %v729 = vpop.f32.mrf.mxu0
    %v730 = vadd.f32 0.0, %v729
    %731 = vdwg.mxu0
    %v732 = vld [vmem:[#allocation2 + $0x20] sm:$0xff]
    %v733 = vld [vmem:[#allocation2 + $0x28] sm:$0xff]
    %v734 = vld [vmem:[#allocation2 + $0x30] sm:$0xff]
    %v735 = vld [vmem:[#allocation2 + $0x38] sm:$0xff]
    %v737 = vsel %vm125, %v548, 0
    %v740 = vsel %vm125, %v574, 0
    %742 = vmatpush.msra.mxu0 0.0
    %743 = vmatpush.msra.mxu0 0.0
    %744 = vmatpush.msra.mxu0 0.0
    %745 = vmatpush.msra.mxu0 0.0
    %746 = vmatpush.msra.mxu0 0.0
    %747 = vmatpush.msra.mxu0 0.0
    %748 = vmatpush.msra.mxu0 0.0
    %749 = vmatpush.msra.mxu0 0.0
    %750 = vmatpush.msra.mxu0 0.0
    %751 = vmatpush.msra.mxu0 0.0
    %752 = vmatpush.msra.mxu0 0.0
    %753 = vmatpush.msra.mxu0 0.0
    %754 = vmatpush.msra.mxu0 0.0
    %755 = vmatpush.msra.mxu0 0.0
    %756 = vmatpush.msra.mxu0 0.0
    %757 = vmatpush.msra.mxu0 %v732
    %758 = vmatmul.f32.gmra.mxu0 %v737
    %v759 = vpop.f32.mrf.mxu0
    %v760 = vadd.f32 0.0, %v759
    %761 = vmatmul.f32.gmra.mxu0 %v740
    %v762 = vpop.f32.mrf.mxu0
    %v763 = vadd.f32 0.0, %v762
    %764 = vdwg.mxu0
    %v766 = vsel %vm125, %v600, 0
    %v769 = vsel %vm125, %v626, 0
    %771 = vmatpush.msra.mxu0 0.0
    %772 = vmatpush.msra.mxu0 0.0
    %773 = vmatpush.msra.mxu0 0.0
    %774 = vmatpush.msra.mxu0 0.0
    %775 = vmatpush.msra.mxu0 0.0
    %776 = vmatpush.msra.mxu0 0.0
    %777 = vmatpush.msra.mxu0 0.0
    %778 = vmatpush.msra.mxu0 0.0
    %779 = vmatpush.msra.mxu0 0.0
    %780 = vmatpush.msra.mxu0 0.0
    %781 = vmatpush.msra.mxu0 0.0
    %782 = vmatpush.msra.mxu0 0.0
    %783 = vmatpush.msra.mxu0 0.0
    %784 = vmatpush.msra.mxu0 0.0
    %785 = vmatpush.msra.mxu0 0.0
    %786 = vmatpush.msra.mxu0 %v733
    %787 = vmatmul.f32.gmra.mxu0 %v766
    %v788 = vpop.f32.mrf.mxu0
    %v789 = vadd.f32 0.0, %v788
    %790 = vmatmul.f32.gmra.mxu0 %v769
    %v791 = vpop.f32.mrf.mxu0
    %v792 = vadd.f32 0.0, %v791
    %793 = vdwg.mxu0
    %v795 = vsel %vm125, %v652, 0
    %v798 = vsel %vm125, %v678, 0
    %800 = vmatpush.msra.mxu0 0.0
    %801 = vmatpush.msra.mxu0 0.0
    %802 = vmatpush.msra.mxu0 0.0
    %803 = vmatpush.msra.mxu0 0.0
    %804 = vmatpush.msra.mxu0 0.0
    %805 = vmatpush.msra.mxu0 0.0
    %806 = vmatpush.msra.mxu0 0.0
    %807 = vmatpush.msra.mxu0 0.0
    %808 = vmatpush.msra.mxu0 0.0
    %809 = vmatpush.msra.mxu0 0.0
    %810 = vmatpush.msra.mxu0 0.0
    %811 = vmatpush.msra.mxu0 0.0
    %812 = vmatpush.msra.mxu0 0.0
    %813 = vmatpush.msra.mxu0 0.0
    %814 = vmatpush.msra.mxu0 0.0
    %815 = vmatpush.msra.mxu0 %v734
    %816 = vmatmul.f32.gmra.mxu0 %v795
    %v817 = vpop.f32.mrf.mxu0
    %v818 = vadd.f32 0.0, %v817
    %819 = vmatmul.f32.gmra.mxu0 %v798
    %v820 = vpop.f32.mrf.mxu0
    %v821 = vadd.f32 0.0, %v820
    %822 = vdwg.mxu0
    %v824 = vsel %vm125, %v704, 0
    %v827 = vsel %vm125, %v730, 0
    %829 = vmatpush.msra.mxu0 0.0
    %830 = vmatpush.msra.mxu0 0.0
    %831 = vmatpush.msra.mxu0 0.0
    %832 = vmatpush.msra.mxu0 0.0
    %833 = vmatpush.msra.mxu0 0.0
    %834 = vmatpush.msra.mxu0 0.0
    %835 = vmatpush.msra.mxu0 0.0
    %836 = vmatpush.msra.mxu0 0.0
    %837 = vmatpush.msra.mxu0 0.0
    %838 = vmatpush.msra.mxu0 0.0
    %839 = vmatpush.msra.mxu0 0.0
    %840 = vmatpush.msra.mxu0 0.0
    %841 = vmatpush.msra.mxu0 0.0
    %842 = vmatpush.msra.mxu0 0.0
    %843 = vmatpush.msra.mxu0 0.0
    %844 = vmatpush.msra.mxu0 %v735
    %845 = vmatmul.f32.gmra.mxu0 %v824
    %v846 = vpop.f32.mrf.mxu0
    %v847 = vadd.f32 0.0, %v846
    %848 = vmatmul.f32.gmra.mxu0 %v827
    %v849 = vpop.f32.mrf.mxu0
    %v850 = vadd.f32 0.0, %v849
    %851 = vdwg.mxu0
    %v852 = vsel %vm55, %v760, 0.0
    %v853 = vsel %vm55, %v789, 0.0
    %v854 = vadd.f32 %v852, %v853
    %v855 = vsel %vm55, %v818, 0.0
    %v856 = vadd.f32 %v854, %v855
    %v857 = vsel %vm55, %v847, 0.0
    %v858 = vadd.f32 %v856, %v857
    %v859 = vsel %vm55, %v763, 0.0
    %v860 = vsel %vm55, %v792, 0.0
    %v861 = vadd.f32 %v859, %v860
    %v862 = vsel %vm55, %v821, 0.0
    %v863 = vadd.f32 %v861, %v862
    %v864 = vsel %vm55, %v850, 0.0
    %v865 = vadd.f32 %v863, %v864
    %v866 = vld [vmem:[%s4 + $0x1] sm:$0x1]
    %v867 = vperm.slane %v866, 0
    %v868 = vadd.f32 %v858, %v867
    %v869 = vadd.f32 %v865, %v867
    %v870 = vadd.f32 %v39, %v868
    %v871 = vadd.f32 %v40, %v869
    %v872 = vld [vmem:[%s4 + $0x2] sm:$0x1]
    %v873 = vld [vmem:[%s4 + $0x3] sm:$0x1]
    %v874 = vsel %vm55, %v870, 0.0
    %875 = vadd.xlane.f32.xlu0 %v874
    %v876 = vpop.xlane.xlu0 %875
    %v877 = vsel %vm55, %v871, 0.0
    %878 = vadd.xlane.f32.xlu0 %v877
    %v879 = vpop.xlane.xlu0 %878
    %v880 = vrcp.pop 32.0
    %v881 = vmul.f32 32.0, %v880
    %v882 = vsub.f32 1.0, %v881
    %v883 = vmul.f32 %v880, %v882
    %v884 = vadd.f32 %v880, %v883
    %vm885 = vweird.f32 %v880
    %v886 = vsel %vm885, %v880, %v884
    %v887 = vmul.f32 %v876, %v886
    %v888 = vmul.f32 %v879, %v886
    %v889 = vsub.f32 %v870, %v887
    %v890 = vsub.f32 %v871, %v888
    %v891 = vmul.f32 %v889, %v889
    %v892 = vmul.f32 %v890, %v890
    %v893 = vsel %vm55, %v891, 0.0
    %894 = vadd.xlane.f32.xlu0 %v893
    %v895 = vpop.xlane.xlu0 %894
    %v896 = vsel %vm55, %v892, 0.0
    %897 = vadd.xlane.f32.xlu0 %v896
    %v898 = vpop.xlane.xlu0 %897
    %v899 = vmul.f32 %v895, %v886
    %v900 = vmul.f32 %v898, %v886
    %v901 = vadd.f32 %v899, 1e-05
    %v902 = vadd.f32 %v900, 1e-05
    %v903 = vrsqrt.pop %v901
    %v904 = vmul.f32 %v903, %v901
    %v905 = vmul.f32 %v904, %v903
    %v906 = vmul.f32 0.5, %v905
    %v907 = vsub.f32 1.5, %v906
    %v908 = vmul.f32 %v903, %v907
    %vm909 = vweird.f32 %v901
    %vm910 = vweird.f32 %v903
    %vm911 = vmor %vm909, %vm910
    %v912 = vsel %vm911, %v903, %v908
    %v913 = vrsqrt.pop %v902
    %v914 = vmul.f32 %v913, %v902
    %v915 = vmul.f32 %v914, %v913
    %v916 = vmul.f32 0.5, %v915
    %v917 = vsub.f32 1.5, %v916
    %v918 = vmul.f32 %v913, %v917
    %vm919 = vweird.f32 %v902
    %vm920 = vweird.f32 %v913
    %vm921 = vmor %vm919, %vm920
    %v922 = vsel %vm921, %v913, %v918
    %v923 = vmul.f32 %v889, %v912
    %v924 = vmul.f32 %v890, %v922
    %v925 = vperm.slane %v872, 0
    %v926 = vmul.f32 %v923, %v925
    %v927 = vmul.f32 %v924, %v925
    %v928 = vperm.slane %v873, 0
    %v929 = vadd.f32 %v926, %v928
    %v930 = vadd.f32 %v927, %v928
    %v931 = vld [vmem:[#allocation2 + $0x40] sm:$0xff]
    %v932 = vld [vmem:[#allocation2 + $0x48] sm:$0xff]
    %v933 = vld [vmem:[#allocation2 + $0x50] sm:$0xff]
    %v934 = vld [vmem:[#allocation2 + $0x58] sm:$0xff]
    %v935 = vld [vmem:[%s4 + $0x4] sm:$0x1]
    %v936 = vperm.slane %v935, 0
    %v938 = vsel %vm55, %v929, 0
    %v941 = vsel %vm55, %v930, 0
    %943 = vmatpush.msra.mxu0 0.0
    %944 = vmatpush.msra.mxu0 0.0
    %945 = vmatpush.msra.mxu0 0.0
    %946 = vmatpush.msra.mxu0 0.0
    %947 = vmatpush.msra.mxu0 0.0
    %948 = vmatpush.msra.mxu0 0.0
    %949 = vmatpush.msra.mxu0 0.0
    %950 = vmatpush.msra.mxu0 0.0
    %951 = vmatpush.msra.mxu0 0.0
    %952 = vmatpush.msra.mxu0 0.0
    %953 = vmatpush.msra.mxu0 0.0
    %954 = vmatpush.msra.mxu0 0.0
    %955 = vmatpush.msra.mxu0 %v934
    %956 = vmatpush.msra.mxu0 %v933
    %957 = vmatpush.msra.mxu0 %v932
    %958 = vmatpush.msra.mxu0 %v931
    %959 = vmatmul.f32.gmra.mxu0 %v938
    %v960 = vpop.f32.mrf.mxu0
    %v961 = vadd.f32 %v936, %v960
    %962 = vmatmul.f32.gmra.mxu0 %v941
    %v963 = vpop.f32.mrf.mxu0
    %v964 = vadd.f32 %v936, %v963
    %965 = vdwg.mxu0
    %v966 = vmax.f32 %v961, 0.0
    %v967 = vmax.f32 %v964, 0.0
    %v968 = vld [vmem:[#allocation2 + $0x60] sm:$0xff]
    %v969 = vld [vmem:[#allocation2 + $0x68] sm:$0xff]
    %v970 = vld [vmem:[#allocation2 + $0x70] sm:$0xff]
    %v971 = vld [vmem:[#allocation2 + $0x78] sm:$0xff]
    %v972 = vld [vmem:[#allocation2 + $0x80] sm:$0xff]
    %v973 = vld [vmem:[#allocation2 + $0x88] sm:$0xff]
    %v974 = vld [vmem:[#allocation2 + $0x90] sm:$0xff]
    %v975 = vld [vmem:[#allocation2 + $0x98] sm:$0xff]
    %v976 = vld [vmem:[%s4 + $0x5] sm:$0x1]
    %v977 = vperm.slane %v976, 0
    %vm978 = vcmask 523264
    %v980 = vsel %vm978, %v966, 0
    %v983 = vsel %vm978, %v967, 0
    %985 = vmatpush.msra.mxu0 0.0
    %986 = vmatpush.msra.mxu0 0.0
    %987 = vmatpush.msra.mxu0 0.0
    %988 = vmatpush.msra.mxu0 0.0
    %989 = vmatpush.msra.mxu0 0.0
    %990 = vmatpush.msra.mxu0 0.0
    %991 = vmatpush.msra.mxu0 0.0
    %992 = vmatpush.msra.mxu0 0.0
    %993 = vmatpush.msra.mxu0 %v975
    %994 = vmatpush.msra.mxu0 %v974
    %995 = vmatpush.msra.mxu0 %v973
    %996 = vmatpush.msra.mxu0 %v972
    %997 = vmatpush.msra.mxu0 %v971
    %998 = vmatpush.msra.mxu0 %v970
    %999 = vmatpush.msra.mxu0 %v969
    %1000 = vmatpush.msra.mxu0 %v968
    %1001 = vmatmul.f32.gmra.mxu0 %v980
    %v1002 = vpop.f32.mrf.mxu0
    %v1003 = vadd.f32 %v977, %v1002
    %1004 = vmatmul.f32.gmra.mxu0 %v983
    %v1005 = vpop.f32.mrf.mxu0
    %v1006 = vadd.f32 %v977, %v1005
    %1007 = vdwg.mxu0
    %v1008 = vadd.f32 %v929, %v1003
    %v1009 = vadd.f32 %v930, %v1006
    %v1010 = vld [vmem:[%s4 + $0x6] sm:$0x1]
    %v1011 = vld [vmem:[%s4 + $0x7] sm:$0x1]
    %v1012 = vsel %vm55, %v1008, 0.0
    %1013 = vadd.xlane.f32.xlu0 %v1012
    %v1014 = vpop.xlane.xlu0 %1013
    %v1015 = vsel %vm55, %v1009, 0.0
    %1016 = vadd.xlane.f32.xlu0 %v1015
    %v1017 = vpop.xlane.xlu0 %1016
    %v1018 = vmul.f32 %v1014, %v886
    %v1019 = vmul.f32 %v1017, %v886
    %v1020 = vsub.f32 %v1008, %v1018
    %v1021 = vsub.f32 %v1009, %v1019
    %v1022 = vmul.f32 %v1020, %v1020
    %v1023 = vmul.f32 %v1021, %v1021
    %v1024 = vsel %vm55, %v1022, 0.0
    %1025 = vadd.xlane.f32.xlu0 %v1024
    %v1026 = vpop.xlane.xlu0 %1025
    %v1027 = vsel %vm55, %v1023, 0.0
    %1028 = vadd.xlane.f32.xlu0 %v1027
    %v1029 = vpop.xlane.xlu0 %1028
    %v1030 = vmul.f32 %v1026, %v886
    %v1031 = vmul.f32 %v1029, %v886
    %v1032 = vadd.f32 %v1030, 1e-05
    %v1033 = vadd.f32 %v1031, 1e-05
    %v1034 = vrsqrt.pop %v1032
    %v1035 = vmul.f32 %v1034, %v1032
    %v1036 = vmul.f32 %v1035, %v1034
    %v1037 = vmul.f32 0.5, %v1036
    %v1038 = vsub.f32 1.5, %v1037
    %v1039 = vmul.f32 %v1034, %v1038
    %vm1040 = vweird.f32 %v1032
    %vm1041 = vweird.f32 %v1034
    %vm1042 = vmor %vm1040, %vm1041
    %v1043 = vsel %vm1042, %v1034, %v1039
    %v1044 = vrsqrt.pop %v1033
    %v1045 = vmul.f32 %v1044, %v1033
    %v1046 = vmul.f32 %v1045, %v1044
    %v1047 = vmul.f32 0.5, %v1046
    %v1048 = vsub.f32 1.5, %v1047
    %v1049 = vmul.f32 %v1044, %v1048
    %vm1050 = vweird.f32 %v1033
    %vm1051 = vweird.f32 %v1044
    %vm1052 = vmor %vm1050, %vm1051
    %v1053 = vsel %vm1052, %v1044, %v1049
    %v1054 = vmul.f32 %v1020, %v1043
    %v1055 = vmul.f32 %v1021, %v1053
    %v1056 = vperm.slane %v1010, 0
    %v1057 = vmul.f32 %v1054, %v1056
    %v1058 = vmul.f32 %v1055, %v1056
    %v1059 = vperm.slane %v1011, 0
    %v1060 = vadd.f32 %v1057, %v1059
    %v1061 = vadd.f32 %v1058, %v1059
    %v1062 = vld [vmem:[#allocation2 + $0xa0] sm:$0xff]
    %v1063 = vld [vmem:[#allocation2 + $0xa8] sm:$0xff]
    %v1064 = vld [vmem:[#allocation2 + $0xb0] sm:$0xff]
    %v1065 = vld [vmem:[#allocation2 + $0xb8] sm:$0xff]
    %v1066 = vld [vmem:[%s4 + $0x8] sm:$0x1]
    %v1067 = vperm.slane %v1066, 0
    %v1069 = vsel %vm55, %v1060, 0
    %v1072 = vsel %vm55, %v1061, 0
    %1074 = vmatpush.msra.mxu0 0.0
    %1075 = vmatpush.msra.mxu0 0.0
    %1076 = vmatpush.msra.mxu0 0.0
    %1077 = vmatpush.msra.mxu0 0.0
    %1078 = vmatpush.msra.mxu0 0.0
    %1079 = vmatpush.msra.mxu0 0.0
    %1080 = vmatpush.msra.mxu0 0.0
    %1081 = vmatpush.msra.mxu0 0.0
    %1082 = vmatpush.msra.mxu0 0.0
    %1083 = vmatpush.msra.mxu0 0.0
    %1084 = vmatpush.msra.mxu0 0.0
    %1085 = vmatpush.msra.mxu0 0.0
    %1086 = vmatpush.msra.mxu0 %v1065
    %1087 = vmatpush.msra.mxu0 %v1064
    %1088 = vmatpush.msra.mxu0 %v1063
    %1089 = vmatpush.msra.mxu0 %v1062
    %1090 = vmatmul.f32.gmra.mxu0 %v1069
    %v1091 = vpop.f32.mrf.mxu0
    %v1092 = vadd.f32 %v1067, %v1091
    %1093 = vmatmul.f32.gmra.mxu0 %v1072
    %v1094 = vpop.f32.mrf.mxu0
    %v1095 = vadd.f32 %v1067, %v1094
    %1096 = vdwg.mxu0
    %1099 = vrot.lane.b32.xlu0 %v1092, 120
    %v1100 = vpop.permute.xlu0 %1099
    %1101 = vrot.lane.b32.xlu0 %v1095, 120
    %v1102 = vpop.permute.xlu0 %1101
    %1103 = vrot.lane.b32.xlu0 %v1092, 112
    %v1104 = vpop.permute.xlu0 %1103
    %1105 = vrot.lane.b32.xlu0 %v1095, 112
    %v1106 = vpop.permute.xlu0 %1105
    %1107 = vrot.lane.b32.xlu0 %v1092, 104
    %v1108 = vpop.permute.xlu0 %1107
    %1109 = vrot.lane.b32.xlu0 %v1095, 104
    %v1110 = vpop.permute.xlu0 %1109
    %1111 = vrot.lane.b32.xlu0 %v1092, 96
    %v1112 = vpop.permute.xlu0 %1111
    %v1113 = vsel %vm125, %v1092, 0
    %v1115 = vsel %vm125, %v1112, 0
    %1117 = vmatpush.xpose.msra.mxu0 0.0
    %1118 = vmatpush.xpose.msra.mxu0 0.0
    %1119 = vmatpush.xpose.msra.mxu0 0.0
    %1120 = vmatpush.xpose.msra.mxu0 0.0
    %1121 = vmatpush.xpose.msra.mxu0 0.0
    %1122 = vmatpush.xpose.msra.mxu0 0.0
    %1123 = vmatpush.xpose.msra.mxu0 0.0
    %1124 = vmatpush.xpose.msra.mxu0 0.0
    %1125 = vmatpush.xpose.msra.mxu0 0.0
    %1126 = vmatpush.xpose.msra.mxu0 0.0
    %1127 = vmatpush.xpose.msra.mxu0 0.0
    %1128 = vmatpush.xpose.msra.mxu0 0.0
    %1129 = vmatpush.xpose.msra.mxu0 0.0
    %1130 = vmatpush.xpose.msra.mxu0 0.0
    %1131 = vmatpush.xpose.msra.mxu0 0.0
    %1132 = vmatpush.xpose.msra.mxu0 %v1115
    %1133 = vmatmul.f32.gmra.mxu0 %v1113
    %v1134 = vpop.f32.mrf.mxu0
    %v1135 = vadd.f32 %v107, %v1134
    %1136 = vdwg.mxu0
    %1137 = vrot.lane.b32.xlu0 %v1095, 96
    %v1138 = vpop.permute.xlu0 %1137
    %v1139 = vsel %vm125, %v1095, 0
    %v1141 = vsel %vm125, %v1138, 0
    %1143 = vmatpush.xpose.msra.mxu0 0.0
    %1144 = vmatpush.xpose.msra.mxu0 0.0
    %1145 = vmatpush.xpose.msra.mxu0 0.0
    %1146 = vmatpush.xpose.msra.mxu0 0.0
    %1147 = vmatpush.xpose.msra.mxu0 0.0
    %1148 = vmatpush.xpose.msra.mxu0 0.0
    %1149 = vmatpush.xpose.msra.mxu0 0.0
    %1150 = vmatpush.xpose.msra.mxu0 0.0
    %1151 = vmatpush.xpose.msra.mxu0 0.0
    %1152 = vmatpush.xpose.msra.mxu0 0.0
    %1153 = vmatpush.xpose.msra.mxu0 0.0
    %1154 = vmatpush.xpose.msra.mxu0 0.0
    %1155 = vmatpush.xpose.msra.mxu0 0.0
    %1156 = vmatpush.xpose.msra.mxu0 0.0
    %1157 = vmatpush.xpose.msra.mxu0 0.0
    %1158 = vmatpush.xpose.msra.mxu0 %v1141
    %1159 = vmatmul.f32.gmra.mxu0 %v1139
    %v1160 = vpop.f32.mrf.mxu0
    %v1161 = vadd.f32 %v108, %v1160
    %1162 = vdwg.mxu0
    %1163 = vrot.lane.b32.xlu0 %v1100, 96
    %v1164 = vpop.permute.xlu0 %1163
    %v1165 = vsel %vm125, %v1100, 0
    %v1167 = vsel %vm125, %v1164, 0
    %1169 = vmatpush.xpose.msra.mxu0 0.0
    %1170 = vmatpush.xpose.msra.mxu0 0.0
    %1171 = vmatpush.xpose.msra.mxu0 0.0
    %1172 = vmatpush.xpose.msra.mxu0 0.0
    %1173 = vmatpush.xpose.msra.mxu0 0.0
    %1174 = vmatpush.xpose.msra.mxu0 0.0
    %1175 = vmatpush.xpose.msra.mxu0 0.0
    %1176 = vmatpush.xpose.msra.mxu0 0.0
    %1177 = vmatpush.xpose.msra.mxu0 0.0
    %1178 = vmatpush.xpose.msra.mxu0 0.0
    %1179 = vmatpush.xpose.msra.mxu0 0.0
    %1180 = vmatpush.xpose.msra.mxu0 0.0
    %1181 = vmatpush.xpose.msra.mxu0 0.0
    %1182 = vmatpush.xpose.msra.mxu0 0.0
    %1183 = vmatpush.xpose.msra.mxu0 0.0
    %1184 = vmatpush.xpose.msra.mxu0 %v1167
    %1185 = vmatmul.f32.gmra.mxu0 %v1165
    %v1186 = vpop.f32.mrf.mxu0
    %v1187 = vadd.f32 %v109, %v1186
    %1188 = vdwg.mxu0
    %1189 = vrot.lane.b32.xlu0 %v1102, 96
    %v1190 = vpop.permute.xlu0 %1189
    %v1191 = vsel %vm125, %v1102, 0
    %v1193 = vsel %vm125, %v1190, 0
    %1195 = vmatpush.xpose.msra.mxu0 0.0
    %1196 = vmatpush.xpose.msra.mxu0 0.0
    %1197 = vmatpush.xpose.msra.mxu0 0.0
    %1198 = vmatpush.xpose.msra.mxu0 0.0
    %1199 = vmatpush.xpose.msra.mxu0 0.0
    %1200 = vmatpush.xpose.msra.mxu0 0.0
    %1201 = vmatpush.xpose.msra.mxu0 0.0
    %1202 = vmatpush.xpose.msra.mxu0 0.0
    %1203 = vmatpush.xpose.msra.mxu0 0.0
    %1204 = vmatpush.xpose.msra.mxu0 0.0
    %1205 = vmatpush.xpose.msra.mxu0 0.0
    %1206 = vmatpush.xpose.msra.mxu0 0.0
    %1207 = vmatpush.xpose.msra.mxu0 0.0
    %1208 = vmatpush.xpose.msra.mxu0 0.0
    %1209 = vmatpush.xpose.msra.mxu0 0.0
    %1210 = vmatpush.xpose.msra.mxu0 %v1193
    %1211 = vmatmul.f32.gmra.mxu0 %v1191
    %v1212 = vpop.f32.mrf.mxu0
    %v1213 = vadd.f32 %v110, %v1212
    %1214 = vdwg.mxu0
    %1215 = vrot.lane.b32.xlu0 %v1104, 96
    %v1216 = vpop.permute.xlu0 %1215
    %v1217 = vsel %vm125, %v1104, 0
    %v1219 = vsel %vm125, %v1216, 0
    %1221 = vmatpush.xpose.msra.mxu0 0.0
    %1222 = vmatpush.xpose.msra.mxu0 0.0
    %1223 = vmatpush.xpose.msra.mxu0 0.0
    %1224 = vmatpush.xpose.msra.mxu0 0.0
    %1225 = vmatpush.xpose.msra.mxu0 0.0
    %1226 = vmatpush.xpose.msra.mxu0 0.0
    %1227 = vmatpush.xpose.msra.mxu0 0.0
    %1228 = vmatpush.xpose.msra.mxu0 0.0
    %1229 = vmatpush.xpose.msra.mxu0 0.0
    %1230 = vmatpush.xpose.msra.mxu0 0.0
    %1231 = vmatpush.xpose.msra.mxu0 0.0
    %1232 = vmatpush.xpose.msra.mxu0 0.0
    %1233 = vmatpush.xpose.msra.mxu0 0.0
    %1234 = vmatpush.xpose.msra.mxu0 0.0
    %1235 = vmatpush.xpose.msra.mxu0 0.0
    %1236 = vmatpush.xpose.msra.mxu0 %v1219
    %1237 = vmatmul.f32.gmra.mxu0 %v1217
    %v1238 = vpop.f32.mrf.mxu0
    %v1239 = vadd.f32 %v111, %v1238
    %1240 = vdwg.mxu0
    %1241 = vrot.lane.b32.xlu0 %v1106, 96
    %v1242 = vpop.permute.xlu0 %1241
    %v1243 = vsel %vm125, %v1106, 0
    %v1245 = vsel %vm125, %v1242, 0
    %1247 = vmatpush.xpose.msra.mxu0 0.0
    %1248 = vmatpush.xpose.msra.mxu0 0.0
    %1249 = vmatpush.xpose.msra.mxu0 0.0
    %1250 = vmatpush.xpose.msra.mxu0 0.0
    %1251 = vmatpush.xpose.msra.mxu0 0.0
    %1252 = vmatpush.xpose.msra.mxu0 0.0
    %1253 = vmatpush.xpose.msra.mxu0 0.0
    %1254 = vmatpush.xpose.msra.mxu0 0.0
    %1255 = vmatpush.xpose.msra.mxu0 0.0
    %1256 = vmatpush.xpose.msra.mxu0 0.0
    %1257 = vmatpush.xpose.msra.mxu0 0.0
    %1258 = vmatpush.xpose.msra.mxu0 0.0
    %1259 = vmatpush.xpose.msra.mxu0 0.0
    %1260 = vmatpush.xpose.msra.mxu0 0.0
    %1261 = vmatpush.xpose.msra.mxu0 0.0
    %1262 = vmatpush.xpose.msra.mxu0 %v1245
    %1263 = vmatmul.f32.gmra.mxu0 %v1243
    %v1264 = vpop.f32.mrf.mxu0
    %v1265 = vadd.f32 %v112, %v1264
    %1266 = vdwg.mxu0
    %1267 = vrot.lane.b32.xlu0 %v1108, 96
    %v1268 = vpop.permute.xlu0 %1267
    %v1269 = vsel %vm125, %v1108, 0
    %v1271 = vsel %vm125, %v1268, 0
    %1273 = vmatpush.xpose.msra.mxu0 0.0
    %1274 = vmatpush.xpose.msra.mxu0 0.0
    %1275 = vmatpush.xpose.msra.mxu0 0.0
    %1276 = vmatpush.xpose.msra.mxu0 0.0
    %1277 = vmatpush.xpose.msra.mxu0 0.0
    %1278 = vmatpush.xpose.msra.mxu0 0.0
    %1279 = vmatpush.xpose.msra.mxu0 0.0
    %1280 = vmatpush.xpose.msra.mxu0 0.0
    %1281 = vmatpush.xpose.msra.mxu0 0.0
    %1282 = vmatpush.xpose.msra.mxu0 0.0
    %1283 = vmatpush.xpose.msra.mxu0 0.0
    %1284 = vmatpush.xpose.msra.mxu0 0.0
    %1285 = vmatpush.xpose.msra.mxu0 0.0
    %1286 = vmatpush.xpose.msra.mxu0 0.0
    %1287 = vmatpush.xpose.msra.mxu0 0.0
    %1288 = vmatpush.xpose.msra.mxu0 %v1271
    %1289 = vmatmul.f32.gmra.mxu0 %v1269
    %v1290 = vpop.f32.mrf.mxu0
    %v1291 = vadd.f32 %v113, %v1290
    %1292 = vdwg.mxu0
    %1293 = vrot.lane.b32.xlu0 %v1110, 96
    %v1294 = vpop.permute.xlu0 %1293
    %v1295 = vsel %vm125, %v1110, 0
    %v1297 = vsel %vm125, %v1294, 0
    %1299 = vmatpush.xpose.msra.mxu0 0.0
    %1300 = vmatpush.xpose.msra.mxu0 0.0
    %1301 = vmatpush.xpose.msra.mxu0 0.0
    %1302 = vmatpush.xpose.msra.mxu0 0.0
    %1303 = vmatpush.xpose.msra.mxu0 0.0
    %1304 = vmatpush.xpose.msra.mxu0 0.0
    %1305 = vmatpush.xpose.msra.mxu0 0.0
    %1306 = vmatpush.xpose.msra.mxu0 0.0
    %1307 = vmatpush.xpose.msra.mxu0 0.0
    %1308 = vmatpush.xpose.msra.mxu0 0.0
    %1309 = vmatpush.xpose.msra.mxu0 0.0
    %1310 = vmatpush.xpose.msra.mxu0 0.0
    %1311 = vmatpush.xpose.msra.mxu0 0.0
    %1312 = vmatpush.xpose.msra.mxu0 0.0
    %1313 = vmatpush.xpose.msra.mxu0 0.0
    %1314 = vmatpush.xpose.msra.mxu0 %v1297
    %1315 = vmatmul.f32.gmra.mxu0 %v1295
    %v1316 = vpop.f32.mrf.mxu0
    %v1317 = vadd.f32 %v114, %v1316
    %1318 = vdwg.mxu0
    %v1319 = vsel %vm125, %v1135, -inf
    %1320 = vmax.xlane.f32.xlu0 %v1319
    %v1321 = vpop.xlane.xlu0 %1320
    %v1322 = vsel %vm125, %v1161, -inf
    %1323 = vmax.xlane.f32.xlu0 %v1322
    %v1324 = vpop.xlane.xlu0 %1323
    %v1325 = vsel %vm125, %v1187, -inf
    %1326 = vmax.xlane.f32.xlu0 %v1325
    %v1327 = vpop.xlane.xlu0 %1326
    %v1328 = vsel %vm125, %v1213, -inf
    %1329 = vmax.xlane.f32.xlu0 %v1328
    %v1330 = vpop.xlane.xlu0 %1329
    %v1331 = vsel %vm125, %v1239, -inf
    %1332 = vmax.xlane.f32.xlu0 %v1331
    %v1333 = vpop.xlane.xlu0 %1332
    %v1334 = vsel %vm125, %v1265, -inf
    %1335 = vmax.xlane.f32.xlu0 %v1334
    %v1336 = vpop.xlane.xlu0 %1335
    %v1337 = vsel %vm125, %v1291, -inf
    %1338 = vmax.xlane.f32.xlu0 %v1337
    %v1339 = vpop.xlane.xlu0 %1338
    %v1340 = vsel %vm125, %v1317, -inf
    %1341 = vmax.xlane.f32.xlu0 %v1340
    %v1342 = vpop.xlane.xlu0 %1341
    %v1343 = vsub.f32 %v1135, %v1321
    %v1344 = vsub.f32 %v1161, %v1324
    %v1345 = vsub.f32 %v1187, %v1327
    %v1346 = vsub.f32 %v1213, %v1330
    %v1347 = vsub.f32 %v1239, %v1333
    %v1348 = vsub.f32 %v1265, %v1336
    %v1349 = vsub.f32 %v1291, %v1339
    %v1350 = vsub.f32 %v1317, %v1342
    %v1351 = vmul.f32 %v1343, 1.442695
    %v1352 = vpow.pop %v1351
    %v1353 = vmul.f32 %v1344, 1.442695
    %v1354 = vpow.pop %v1353
    %v1355 = vmul.f32 %v1345, 1.442695
    %v1356 = vpow.pop %v1355
    %v1357 = vmul.f32 %v1346, 1.442695
    %v1358 = vpow.pop %v1357
    %v1359 = vmul.f32 %v1347, 1.442695
    %v1360 = vpow.pop %v1359
    %v1361 = vmul.f32 %v1348, 1.442695
    %v1362 = vpow.pop %v1361
    %v1363 = vmul.f32 %v1349, 1.442695
    %v1364 = vpow.pop %v1363
    %v1365 = vmul.f32 %v1350, 1.442695
    %v1366 = vpow.pop %v1365
    %v1367 = vsel %vm125, %v1352, 0.0
    %1368 = vadd.xlane.f32.xlu0 %v1367
    %v1369 = vpop.xlane.xlu0 %1368
    %v1370 = vsel %vm125, %v1354, 0.0
    %1371 = vadd.xlane.f32.xlu0 %v1370
    %v1372 = vpop.xlane.xlu0 %1371
    %v1373 = vsel %vm125, %v1356, 0.0
    %1374 = vadd.xlane.f32.xlu0 %v1373
    %v1375 = vpop.xlane.xlu0 %1374
    %v1376 = vsel %vm125, %v1358, 0.0
    %1377 = vadd.xlane.f32.xlu0 %v1376
    %v1378 = vpop.xlane.xlu0 %1377
    %v1379 = vsel %vm125, %v1360, 0.0
    %1380 = vadd.xlane.f32.xlu0 %v1379
    %v1381 = vpop.xlane.xlu0 %1380
    %v1382 = vsel %vm125, %v1362, 0.0
    %1383 = vadd.xlane.f32.xlu0 %v1382
    %v1384 = vpop.xlane.xlu0 %1383
    %v1385 = vsel %vm125, %v1364, 0.0
    %1386 = vadd.xlane.f32.xlu0 %v1385
    %v1387 = vpop.xlane.xlu0 %1386
    %v1388 = vsel %vm125, %v1366, 0.0
    %1389 = vadd.xlane.f32.xlu0 %v1388
    %v1390 = vpop.xlane.xlu0 %1389
    %v1391 = vrcp.pop %v1369
    %v1392 = vmul.f32 %v1369, %v1391
    %v1393 = vsub.f32 1.0, %v1392
    %v1394 = vmul.f32 %v1391, %v1393
    %v1395 = vadd.f32 %v1391, %v1394
    %vm1396 = vweird.f32 %v1369
    %vm1397 = vweird.f32 %v1391
    %vm1398 = vmor %vm1396, %vm1397
    %v1399 = vsel %vm1398, %v1391, %v1395
    %v1400 = vand.u32 2147483647, %v1369
    %vm1401 = vcmp.eq.f32.partialorder %v1400, 8.507059e+37
    %v1402 = vand.u32 %v1369, 2147483648
    %v1403 = vor.u32 1.1754944e-38, %v1402
    %v1404 = vsel %vm1401, %v1403, %v1399
    %v1405 = vrcp.pop %v1372
    %v1406 = vmul.f32 %v1372, %v1405
    %v1407 = vsub.f32 1.0, %v1406
    %v1408 = vmul.f32 %v1405, %v1407
    %v1409 = vadd.f32 %v1405, %v1408
    %vm1410 = vweird.f32 %v1372
    %vm1411 = vweird.f32 %v1405
    %vm1412 = vmor %vm1410, %vm1411
    %v1413 = vsel %vm1412, %v1405, %v1409
    %v1414 = vand.u32 2147483647, %v1372
    %vm1415 = vcmp.eq.f32.partialorder %v1414, 8.507059e+37
    %v1416 = vand.u32 %v1372, 2147483648
    %v1417 = vor.u32 1.1754944e-38, %v1416
    %v1418 = vsel %vm1415, %v1417, %v1413
    %v1419 = vrcp.pop %v1375
    %v1420 = vmul.f32 %v1375, %v1419
    %v1421 = vsub.f32 1.0, %v1420
    %v1422 = vmul.f32 %v1419, %v1421
    %v1423 = vadd.f32 %v1419, %v1422
    %vm1424 = vweird.f32 %v1375
    %vm1425 = vweird.f32 %v1419
    %vm1426 = vmor %vm1424, %vm1425
    %v1427 = vsel %vm1426, %v1419, %v1423
    %v1428 = vand.u32 2147483647, %v1375
    %vm1429 = vcmp.eq.f32.partialorder %v1428, 8.507059e+37
    %v1430 = vand.u32 %v1375, 2147483648
    %v1431 = vor.u32 1.1754944e-38, %v1430
    %v1432 = vsel %vm1429, %v1431, %v1427
    %v1433 = vrcp.pop %v1378
    %v1434 = vmul.f32 %v1378, %v1433
    %v1435 = vsub.f32 1.0, %v1434
    %v1436 = vmul.f32 %v1433, %v1435
    %v1437 = vadd.f32 %v1433, %v1436
    %vm1438 = vweird.f32 %v1378
    %vm1439 = vweird.f32 %v1433
    %vm1440 = vmor %vm1438, %vm1439
    %v1441 = vsel %vm1440, %v1433, %v1437
    %v1442 = vand.u32 2147483647, %v1378
    %vm1443 = vcmp.eq.f32.partialorder %v1442, 8.507059e+37
    %v1444 = vand.u32 %v1378, 2147483648
    %v1445 = vor.u32 1.1754944e-38, %v1444
    %v1446 = vsel %vm1443, %v1445, %v1441
    %v1447 = vrcp.pop %v1381
    %v1448 = vmul.f32 %v1381, %v1447
    %v1449 = vsub.f32 1.0, %v1448
    %v1450 = vmul.f32 %v1447, %v1449
    %v1451 = vadd.f32 %v1447, %v1450
    %vm1452 = vweird.f32 %v1381
    %vm1453 = vweird.f32 %v1447
    %vm1454 = vmor %vm1452, %vm1453
    %v1455 = vsel %vm1454, %v1447, %v1451
    %v1456 = vand.u32 2147483647, %v1381
    %vm1457 = vcmp.eq.f32.partialorder %v1456, 8.507059e+37
    %v1458 = vand.u32 %v1381, 2147483648
    %v1459 = vor.u32 1.1754944e-38, %v1458
    %v1460 = vsel %vm1457, %v1459, %v1455
    %v1461 = vrcp.pop %v1384
    %v1462 = vmul.f32 %v1384, %v1461
    %v1463 = vsub.f32 1.0, %v1462
    %v1464 = vmul.f32 %v1461, %v1463
    %v1465 = vadd.f32 %v1461, %v1464
    %vm1466 = vweird.f32 %v1384
    %vm1467 = vweird.f32 %v1461
    %vm1468 = vmor %vm1466, %vm1467
    %v1469 = vsel %vm1468, %v1461, %v1465
    %v1470 = vand.u32 2147483647, %v1384
    %vm1471 = vcmp.eq.f32.partialorder %v1470, 8.507059e+37
    %v1472 = vand.u32 %v1384, 2147483648
    %v1473 = vor.u32 1.1754944e-38, %v1472
    %v1474 = vsel %vm1471, %v1473, %v1469
    %v1475 = vrcp.pop %v1387
    %v1476 = vmul.f32 %v1387, %v1475
    %v1477 = vsub.f32 1.0, %v1476
    %v1478 = vmul.f32 %v1475, %v1477
    %v1479 = vadd.f32 %v1475, %v1478
    %vm1480 = vweird.f32 %v1387
    %vm1481 = vweird.f32 %v1475
    %vm1482 = vmor %vm1480, %vm1481
    %v1483 = vsel %vm1482, %v1475, %v1479
    %v1484 = vand.u32 2147483647, %v1387
    %vm1485 = vcmp.eq.f32.partialorder %v1484, 8.507059e+37
    %v1486 = vand.u32 %v1387, 2147483648
    %v1487 = vor.u32 1.1754944e-38, %v1486
    %v1488 = vsel %vm1485, %v1487, %v1483
    %v1489 = vrcp.pop %v1390
    %v1490 = vmul.f32 %v1390, %v1489
    %v1491 = vsub.f32 1.0, %v1490
    %v1492 = vmul.f32 %v1489, %v1491
    %v1493 = vadd.f32 %v1489, %v1492
    %vm1494 = vweird.f32 %v1390
    %vm1495 = vweird.f32 %v1489
    %vm1496 = vmor %vm1494, %vm1495
    %v1497 = vsel %vm1496, %v1489, %v1493
    %v1498 = vand.u32 2147483647, %v1390
    %vm1499 = vcmp.eq.f32.partialorder %v1498, 8.507059e+37
    %v1500 = vand.u32 %v1390, 2147483648
    %v1501 = vor.u32 1.1754944e-38, %v1500
    %v1502 = vsel %vm1499, %v1501, %v1497
    %v1503 = vmul.f32 %v1352, %v1404
    %v1504 = vmul.f32 %v1354, %v1418
    %v1505 = vmul.f32 %v1356, %v1432
    %v1506 = vmul.f32 %v1358, %v1446
    %v1507 = vmul.f32 %v1360, %v1460
    %v1508 = vmul.f32 %v1362, %v1474
    %v1509 = vmul.f32 %v1364, %v1488
    %v1510 = vmul.f32 %v1366, %v1502
    %1511 = vrot.lane.b32.xlu0 %v1092, 64
    %v1512 = vpop.permute.xlu0 %1511
    %v1515 = vsel %vm125, %v1503, 0
    %1517 = vmatpush.msra.mxu0 0.0
    %1518 = vmatpush.msra.mxu0 0.0
    %1519 = vmatpush.msra.mxu0 0.0
    %1520 = vmatpush.msra.mxu0 0.0
    %1521 = vmatpush.msra.mxu0 0.0
    %1522 = vmatpush.msra.mxu0 0.0
    %1523 = vmatpush.msra.mxu0 0.0
    %1524 = vmatpush.msra.mxu0 0.0
    %1525 = vmatpush.msra.mxu0 0.0
    %1526 = vmatpush.msra.mxu0 0.0
    %1527 = vmatpush.msra.mxu0 0.0
    %1528 = vmatpush.msra.mxu0 0.0
    %1529 = vmatpush.msra.mxu0 0.0
    %1530 = vmatpush.msra.mxu0 0.0
    %1531 = vmatpush.msra.mxu0 0.0
    %1532 = vmatpush.msra.mxu0 %v1512
    %1533 = vmatmul.f32.gmra.mxu0 %v1515
    %v1534 = vpop.f32.mrf.mxu0
    %v1535 = vadd.f32 0.0, %v1534
    %1536 = vdwg.mxu0
    %1537 = vrot.lane.b32.xlu0 %v1095, 64
    %v1538 = vpop.permute.xlu0 %1537
    %v1541 = vsel %vm125, %v1504, 0
    %1543 = vmatpush.msra.mxu0 0.0
    %1544 = vmatpush.msra.mxu0 0.0
    %1545 = vmatpush.msra.mxu0 0.0
    %1546 = vmatpush.msra.mxu0 0.0
    %1547 = vmatpush.msra.mxu0 0.0
    %1548 = vmatpush.msra.mxu0 0.0
    %1549 = vmatpush.msra.mxu0 0.0
    %1550 = vmatpush.msra.mxu0 0.0
    %1551 = vmatpush.msra.mxu0 0.0
    %1552 = vmatpush.msra.mxu0 0.0
    %1553 = vmatpush.msra.mxu0 0.0
    %1554 = vmatpush.msra.mxu0 0.0
    %1555 = vmatpush.msra.mxu0 0.0
    %1556 = vmatpush.msra.mxu0 0.0
    %1557 = vmatpush.msra.mxu0 0.0
    %1558 = vmatpush.msra.mxu0 %v1538
    %1559 = vmatmul.f32.gmra.mxu0 %v1541
    %v1560 = vpop.f32.mrf.mxu0
    %v1561 = vadd.f32 0.0, %v1560
    %1562 = vdwg.mxu0
    %1563 = vrot.lane.b32.xlu0 %v1100, 64
    %v1564 = vpop.permute.xlu0 %1563
    %v1567 = vsel %vm125, %v1505, 0
    %1569 = vmatpush.msra.mxu0 0.0
    %1570 = vmatpush.msra.mxu0 0.0
    %1571 = vmatpush.msra.mxu0 0.0
    %1572 = vmatpush.msra.mxu0 0.0
    %1573 = vmatpush.msra.mxu0 0.0
    %1574 = vmatpush.msra.mxu0 0.0
    %1575 = vmatpush.msra.mxu0 0.0
    %1576 = vmatpush.msra.mxu0 0.0
    %1577 = vmatpush.msra.mxu0 0.0
    %1578 = vmatpush.msra.mxu0 0.0
    %1579 = vmatpush.msra.mxu0 0.0
    %1580 = vmatpush.msra.mxu0 0.0
    %1581 = vmatpush.msra.mxu0 0.0
    %1582 = vmatpush.msra.mxu0 0.0
    %1583 = vmatpush.msra.mxu0 0.0
    %1584 = vmatpush.msra.mxu0 %v1564
    %1585 = vmatmul.f32.gmra.mxu0 %v1567
    %v1586 = vpop.f32.mrf.mxu0
    %v1587 = vadd.f32 0.0, %v1586
    %1588 = vdwg.mxu0
    %1589 = vrot.lane.b32.xlu0 %v1102, 64
    %v1590 = vpop.permute.xlu0 %1589
    %v1593 = vsel %vm125, %v1506, 0
    %1595 = vmatpush.msra.mxu0 0.0
    %1596 = vmatpush.msra.mxu0 0.0
    %1597 = vmatpush.msra.mxu0 0.0
    %1598 = vmatpush.msra.mxu0 0.0
    %1599 = vmatpush.msra.mxu0 0.0
    %1600 = vmatpush.msra.mxu0 0.0
    %1601 = vmatpush.msra.mxu0 0.0
    %1602 = vmatpush.msra.mxu0 0.0
    %1603 = vmatpush.msra.mxu0 0.0
    %1604 = vmatpush.msra.mxu0 0.0
    %1605 = vmatpush.msra.mxu0 0.0
    %1606 = vmatpush.msra.mxu0 0.0
    %1607 = vmatpush.msra.mxu0 0.0
    %1608 = vmatpush.msra.mxu0 0.0
    %1609 = vmatpush.msra.mxu0 0.0
    %1610 = vmatpush.msra.mxu0 %v1590
    %1611 = vmatmul.f32.gmra.mxu0 %v1593
    %v1612 = vpop.f32.mrf.mxu0
    %v1613 = vadd.f32 0.0, %v1612
    %1614 = vdwg.mxu0
    %1615 = vrot.lane.b32.xlu0 %v1104, 64
    %v1616 = vpop.permute.xlu0 %1615
    %v1619 = vsel %vm125, %v1507, 0
    %1621 = vmatpush.msra.mxu0 0.0
    %1622 = vmatpush.msra.mxu0 0.0
    %1623 = vmatpush.msra.mxu0 0.0
    %1624 = vmatpush.msra.mxu0 0.0
    %1625 = vmatpush.msra.mxu0 0.0
    %1626 = vmatpush.msra.mxu0 0.0
    %1627 = vmatpush.msra.mxu0 0.0
    %1628 = vmatpush.msra.mxu0 0.0
    %1629 = vmatpush.msra.mxu0 0.0
    %1630 = vmatpush.msra.mxu0 0.0
    %1631 = vmatpush.msra.mxu0 0.0
    %1632 = vmatpush.msra.mxu0 0.0
    %1633 = vmatpush.msra.mxu0 0.0
    %1634 = vmatpush.msra.mxu0 0.0
    %1635 = vmatpush.msra.mxu0 0.0
    %1636 = vmatpush.msra.mxu0 %v1616
    %1637 = vmatmul.f32.gmra.mxu0 %v1619
    %v1638 = vpop.f32.mrf.mxu0
    %v1639 = vadd.f32 0.0, %v1638
    %1640 = vdwg.mxu0
    %1641 = vrot.lane.b32.xlu0 %v1106, 64
    %v1642 = vpop.permute.xlu0 %1641
    %v1645 = vsel %vm125, %v1508, 0
    %1647 = vmatpush.msra.mxu0 0.0
    %1648 = vmatpush.msra.mxu0 0.0
    %1649 = vmatpush.msra.mxu0 0.0
    %1650 = vmatpush.msra.mxu0 0.0
    %1651 = vmatpush.msra.mxu0 0.0
    %1652 = vmatpush.msra.mxu0 0.0
    %1653 = vmatpush.msra.mxu0 0.0
    %1654 = vmatpush.msra.mxu0 0.0
    %1655 = vmatpush.msra.mxu0 0.0
    %1656 = vmatpush.msra.mxu0 0.0
    %1657 = vmatpush.msra.mxu0 0.0
    %1658 = vmatpush.msra.mxu0 0.0
    %1659 = vmatpush.msra.mxu0 0.0
    %1660 = vmatpush.msra.mxu0 0.0
    %1661 = vmatpush.msra.mxu0 0.0
    %1662 = vmatpush.msra.mxu0 %v1642
    %1663 = vmatmul.f32.gmra.mxu0 %v1645
    %v1664 = vpop.f32.mrf.mxu0
    %v1665 = vadd.f32 0.0, %v1664
    %1666 = vdwg.mxu0
    %1667 = vrot.lane.b32.xlu0 %v1108, 64
    %v1668 = vpop.permute.xlu0 %1667
    %v1671 = vsel %vm125, %v1509, 0
    %1673 = vmatpush.msra.mxu0 0.0
    %1674 = vmatpush.msra.mxu0 0.0
    %1675 = vmatpush.msra.mxu0 0.0
    %1676 = vmatpush.msra.mxu0 0.0
    %1677 = vmatpush.msra.mxu0 0.0
    %1678 = vmatpush.msra.mxu0 0.0
    %1679 = vmatpush.msra.mxu0 0.0
    %1680 = vmatpush.msra.mxu0 0.0
    %1681 = vmatpush.msra.mxu0 0.0
    %1682 = vmatpush.msra.mxu0 0.0
    %1683 = vmatpush.msra.mxu0 0.0
    %1684 = vmatpush.msra.mxu0 0.0
    %1685 = vmatpush.msra.mxu0 0.0
    %1686 = vmatpush.msra.mxu0 0.0
    %1687 = vmatpush.msra.mxu0 0.0
    %1688 = vmatpush.msra.mxu0 %v1668
    %1689 = vmatmul.f32.gmra.mxu0 %v1671
    %v1690 = vpop.f32.mrf.mxu0
    %v1691 = vadd.f32 0.0, %v1690
    %1692 = vdwg.mxu0
    %1693 = vrot.lane.b32.xlu0 %v1110, 64
    %v1694 = vpop.permute.xlu0 %1693
    %v1697 = vsel %vm125, %v1510, 0
    %1699 = vmatpush.msra.mxu0 0.0
    %1700 = vmatpush.msra.mxu0 0.0
    %1701 = vmatpush.msra.mxu0 0.0
    %1702 = vmatpush.msra.mxu0 0.0
    %1703 = vmatpush.msra.mxu0 0.0
    %1704 = vmatpush.msra.mxu0 0.0
    %1705 = vmatpush.msra.mxu0 0.0
    %1706 = vmatpush.msra.mxu0 0.0
    %1707 = vmatpush.msra.mxu0 0.0
    %1708 = vmatpush.msra.mxu0 0.0
    %1709 = vmatpush.msra.mxu0 0.0
    %1710 = vmatpush.msra.mxu0 0.0
    %1711 = vmatpush.msra.mxu0 0.0
    %1712 = vmatpush.msra.mxu0 0.0
    %1713 = vmatpush.msra.mxu0 0.0
    %1714 = vmatpush.msra.mxu0 %v1694
    %1715 = vmatmul.f32.gmra.mxu0 %v1697
    %v1716 = vpop.f32.mrf.mxu0
    %v1717 = vadd.f32 0.0, %v1716
    %1718 = vdwg.mxu0
    %v1719 = vld [vmem:[#allocation2 + $0xc0] sm:$0xff]
    %v1720 = vld [vmem:[#allocation2 + $0xc8] sm:$0xff]
    %v1721 = vld [vmem:[#allocation2 + $0xd0] sm:$0xff]
    %v1722 = vld [vmem:[#allocation2 + $0xd8] sm:$0xff]
    %v1724 = vsel %vm125, %v1535, 0
    %v1727 = vsel %vm125, %v1561, 0
    %1729 = vmatpush.msra.mxu0 0.0
    %1730 = vmatpush.msra.mxu0 0.0
    %1731 = vmatpush.msra.mxu0 0.0
    %1732 = vmatpush.msra.mxu0 0.0
    %1733 = vmatpush.msra.mxu0 0.0
    %1734 = vmatpush.msra.mxu0 0.0
    %1735 = vmatpush.msra.mxu0 0.0
    %1736 = vmatpush.msra.mxu0 0.0
    %1737 = vmatpush.msra.mxu0 0.0
    %1738 = vmatpush.msra.mxu0 0.0
    %1739 = vmatpush.msra.mxu0 0.0
    %1740 = vmatpush.msra.mxu0 0.0
    %1741 = vmatpush.msra.mxu0 0.0
    %1742 = vmatpush.msra.mxu0 0.0
    %1743 = vmatpush.msra.mxu0 0.0
    %1744 = vmatpush.msra.mxu0 %v1719
    %1745 = vmatmul.f32.gmra.mxu0 %v1724
    %v1746 = vpop.f32.mrf.mxu0
    %v1747 = vadd.f32 0.0, %v1746
    %1748 = vmatmul.f32.gmra.mxu0 %v1727
    %v1749 = vpop.f32.mrf.mxu0
    %v1750 = vadd.f32 0.0, %v1749
    %1751 = vdwg.mxu0
    %v1753 = vsel %vm125, %v1587, 0
    %v1756 = vsel %vm125, %v1613, 0
    %1758 = vmatpush.msra.mxu0 0.0
    %1759 = vmatpush.msra.mxu0 0.0
    %1760 = vmatpush.msra.mxu0 0.0
    %1761 = vmatpush.msra.mxu0 0.0
    %1762 = vmatpush.msra.mxu0 0.0
    %1763 = vmatpush.msra.mxu0 0.0
    %1764 = vmatpush.msra.mxu0 0.0
    %1765 = vmatpush.msra.mxu0 0.0
    %1766 = vmatpush.msra.mxu0 0.0
    %1767 = vmatpush.msra.mxu0 0.0
    %1768 = vmatpush.msra.mxu0 0.0
    %1769 = vmatpush.msra.mxu0 0.0
    %1770 = vmatpush.msra.mxu0 0.0
    %1771 = vmatpush.msra.mxu0 0.0
    %1772 = vmatpush.msra.mxu0 0.0
    %1773 = vmatpush.msra.mxu0 %v1720
    %1774 = vmatmul.f32.gmra.mxu0 %v1753
    %v1775 = vpop.f32.mrf.mxu0
    %v1776 = vadd.f32 0.0, %v1775
    %1777 = vmatmul.f32.gmra.mxu0 %v1756
    %v1778 = vpop.f32.mrf.mxu0
    %v1779 = vadd.f32 0.0, %v1778
    %1780 = vdwg.mxu0
    %v1782 = vsel %vm125, %v1639, 0
    %v1785 = vsel %vm125, %v1665, 0
    %1787 = vmatpush.msra.mxu0 0.0
    %1788 = vmatpush.msra.mxu0 0.0
    %1789 = vmatpush.msra.mxu0 0.0
    %1790 = vmatpush.msra.mxu0 0.0
    %1791 = vmatpush.msra.mxu0 0.0
    %1792 = vmatpush.msra.mxu0 0.0
    %1793 = vmatpush.msra.mxu0 0.0
    %1794 = vmatpush.msra.mxu0 0.0
    %1795 = vmatpush.msra.mxu0 0.0
    %1796 = vmatpush.msra.mxu0 0.0
    %1797 = vmatpush.msra.mxu0 0.0
    %1798 = vmatpush.msra.mxu0 0.0
    %1799 = vmatpush.msra.mxu0 0.0
    %1800 = vmatpush.msra.mxu0 0.0
    %1801 = vmatpush.msra.mxu0 0.0
    %1802 = vmatpush.msra.mxu0 %v1721
    %1803 = vmatmul.f32.gmra.mxu0 %v1782
    %v1804 = vpop.f32.mrf.mxu0
    %v1805 = vadd.f32 0.0, %v1804
    %1806 = vmatmul.f32.gmra.mxu0 %v1785
    %v1807 = vpop.f32.mrf.mxu0
    %v1808 = vadd.f32 0.0, %v1807
    %1809 = vdwg.mxu0
    %v1811 = vsel %vm125, %v1691, 0
    %v1814 = vsel %vm125, %v1717, 0
    %1816 = vmatpush.msra.mxu0 0.0
    %1817 = vmatpush.msra.mxu0 0.0
    %1818 = vmatpush.msra.mxu0 0.0
    %1819 = vmatpush.msra.mxu0 0.0
    %1820 = vmatpush.msra.mxu0 0.0
    %1821 = vmatpush.msra.mxu0 0.0
    %1822 = vmatpush.msra.mxu0 0.0
    %1823 = vmatpush.msra.mxu0 0.0
    %1824 = vmatpush.msra.mxu0 0.0
    %1825 = vmatpush.msra.mxu0 0.0
    %1826 = vmatpush.msra.mxu0 0.0
    %1827 = vmatpush.msra.mxu0 0.0
    %1828 = vmatpush.msra.mxu0 0.0
    %1829 = vmatpush.msra.mxu0 0.0
    %1830 = vmatpush.msra.mxu0 0.0
    %1831 = vmatpush.msra.mxu0 %v1722
    %1832 = vmatmul.f32.gmra.mxu0 %v1811
    %v1833 = vpop.f32.mrf.mxu0
    %v1834 = vadd.f32 0.0, %v1833
    %1835 = vmatmul.f32.gmra.mxu0 %v1814
    %v1836 = vpop.f32.mrf.mxu0
    %v1837 = vadd.f32 0.0, %v1836
    %1838 = vdwg.mxu0
    %v1839 = vsel %vm55, %v1747, 0.0
    %v1840 = vsel %vm55, %v1776, 0.0
    %v1841 = vadd.f32 %v1839, %v1840
    %v1842 = vsel %vm55, %v1805, 0.0
    %v1843 = vadd.f32 %v1841, %v1842
    %v1844 = vsel %vm55, %v1834, 0.0
    %v1845 = vadd.f32 %v1843, %v1844
    %v1846 = vsel %vm55, %v1750, 0.0
    %v1847 = vsel %vm55, %v1779, 0.0
    %v1848 = vadd.f32 %v1846, %v1847
    %v1849 = vsel %vm55, %v1808, 0.0
    %v1850 = vadd.f32 %v1848, %v1849
    %v1851 = vsel %vm55, %v1837, 0.0
    %v1852 = vadd.f32 %v1850, %v1851
    %v1853 = vld [vmem:[%s4 + $0x9] sm:$0x1]
    %v1854 = vperm.slane %v1853, 0
    %v1855 = vadd.f32 %v1845, %v1854
    %v1856 = vadd.f32 %v1852, %v1854
    %v1857 = vadd.f32 %v1060, %v1855
    %v1858 = vadd.f32 %v1061, %v1856
    %v1859 = vld [vmem:[%s4 + $0xa] sm:$0x1]
    %v1860 = vld [vmem:[%s4 + $0xb] sm:$0x1]
    %v1861 = vsel %vm55, %v1857, 0.0
    %1862 = vadd.xlane.f32.xlu0 %v1861
    %v1863 = vpop.xlane.xlu0 %1862
    %v1864 = vsel %vm55, %v1858, 0.0
    %1865 = vadd.xlane.f32.xlu0 %v1864
    %v1866 = vpop.xlane.xlu0 %1865
    %v1867 = vmul.f32 %v1863, %v886
    %v1868 = vmul.f32 %v1866, %v886
    %v1869 = vsub.f32 %v1857, %v1867
    %v1870 = vsub.f32 %v1858, %v1868
    %v1871 = vmul.f32 %v1869, %v1869
    %v1872 = vmul.f32 %v1870, %v1870
    %v1873 = vsel %vm55, %v1871, 0.0
    %1874 = vadd.xlane.f32.xlu0 %v1873
    %v1875 = vpop.xlane.xlu0 %1874
    %v1876 = vsel %vm55, %v1872, 0.0
    %1877 = vadd.xlane.f32.xlu0 %v1876
    %v1878 = vpop.xlane.xlu0 %1877
    %v1879 = vmul.f32 %v1875, %v886
    %v1880 = vmul.f32 %v1878, %v886
    %v1881 = vadd.f32 %v1879, 1e-05
    %v1882 = vadd.f32 %v1880, 1e-05
    %v1883 = vrsqrt.pop %v1881
    %v1884 = vmul.f32 %v1883, %v1881
    %v1885 = vmul.f32 %v1884, %v1883
    %v1886 = vmul.f32 0.5, %v1885
    %v1887 = vsub.f32 1.5, %v1886
    %v1888 = vmul.f32 %v1883, %v1887
    %vm1889 = vweird.f32 %v1881
    %vm1890 = vweird.f32 %v1883
    %vm1891 = vmor %vm1889, %vm1890
    %v1892 = vsel %vm1891, %v1883, %v1888
    %v1893 = vrsqrt.pop %v1882
    %v1894 = vmul.f32 %v1893, %v1882
    %v1895 = vmul.f32 %v1894, %v1893
    %v1896 = vmul.f32 0.5, %v1895
    %v1897 = vsub.f32 1.5, %v1896
    %v1898 = vmul.f32 %v1893, %v1897
    %vm1899 = vweird.f32 %v1882
    %vm1900 = vweird.f32 %v1893
    %vm1901 = vmor %vm1899, %vm1900
    %v1902 = vsel %vm1901, %v1893, %v1898
    %v1903 = vmul.f32 %v1869, %v1892
    %v1904 = vmul.f32 %v1870, %v1902
    %v1905 = vperm.slane %v1859, 0
    %v1906 = vmul.f32 %v1903, %v1905
    %v1907 = vmul.f32 %v1904, %v1905
    %v1908 = vperm.slane %v1860, 0
    %v1909 = vadd.f32 %v1906, %v1908
    %v1910 = vadd.f32 %v1907, %v1908
    %v1911 = vld [vmem:[#allocation2 + $0xe0] sm:$0xff]
    %v1912 = vld [vmem:[#allocation2 + $0xe8] sm:$0xff]
    %v1913 = vld [vmem:[#allocation2 + $0xf0] sm:$0xff]
    %v1914 = vld [vmem:[#allocation2 + $0xf8] sm:$0xff]
    %v1915 = vld [vmem:[%s4 + $0xc] sm:$0x1]
    %v1916 = vperm.slane %v1915, 0
    %v1918 = vsel %vm55, %v1909, 0
    %v1921 = vsel %vm55, %v1910, 0
    %1923 = vmatpush.msra.mxu0 0.0
    %1924 = vmatpush.msra.mxu0 0.0
    %1925 = vmatpush.msra.mxu0 0.0
    %1926 = vmatpush.msra.mxu0 0.0
    %1927 = vmatpush.msra.mxu0 0.0
    %1928 = vmatpush.msra.mxu0 0.0
    %1929 = vmatpush.msra.mxu0 0.0
    %1930 = vmatpush.msra.mxu0 0.0
    %1931 = vmatpush.msra.mxu0 0.0
    %1932 = vmatpush.msra.mxu0 0.0
    %1933 = vmatpush.msra.mxu0 0.0
    %1934 = vmatpush.msra.mxu0 0.0
    %1935 = vmatpush.msra.mxu0 %v1914
    %1936 = vmatpush.msra.mxu0 %v1913
    %1937 = vmatpush.msra.mxu0 %v1912
    %1938 = vmatpush.msra.mxu0 %v1911
    %1939 = vmatmul.f32.gmra.mxu0 %v1918
    %v1940 = vpop.f32.mrf.mxu0
    %v1941 = vadd.f32 %v1916, %v1940
    %1942 = vmatmul.f32.gmra.mxu0 %v1921
    %v1943 = vpop.f32.mrf.mxu0
    %v1944 = vadd.f32 %v1916, %v1943
    %1945 = vdwg.mxu0
    %v1946 = vmax.f32 %v1941, 0.0
    %v1947 = vmax.f32 %v1944, 0.0
    %v1948 = vld [vmem:[#allocation2 + $0x100] sm:$0xff]
    %v1949 = vld [vmem:[#allocation2 + $0x108] sm:$0xff]
    %v1950 = vld [vmem:[#allocation2 + $0x110] sm:$0xff]
    %v1951 = vld [vmem:[#allocation2 + $0x118] sm:$0xff]
    %v1952 = vld [vmem:[#allocation2 + $0x120] sm:$0xff]
    %v1953 = vld [vmem:[#allocation2 + $0x128] sm:$0xff]
    %v1954 = vld [vmem:[#allocation2 + $0x130] sm:$0xff]
    %v1955 = vld [vmem:[#allocation2 + $0x138] sm:$0xff]
    %v1956 = vld [vmem:[%s4 + $0xd] sm:$0x1]
    %v1957 = vperm.slane %v1956, 0
    %v1959 = vsel %vm978, %v1946, 0
    %v1962 = vsel %vm978, %v1947, 0
    %1964 = vmatpush.msra.mxu0 0.0
    %1965 = vmatpush.msra.mxu0 0.0
    %1966 = vmatpush.msra.mxu0 0.0
    %1967 = vmatpush.msra.mxu0 0.0
    %1968 = vmatpush.msra.mxu0 0.0
    %1969 = vmatpush.msra.mxu0 0.0
    %1970 = vmatpush.msra.mxu0 0.0
    %1971 = vmatpush.msra.mxu0 0.0
    %1972 = vmatpush.msra.mxu0 %v1955
    %1973 = vmatpush.msra.mxu0 %v1954
    %1974 = vmatpush.msra.mxu0 %v1953
    %1975 = vmatpush.msra.mxu0 %v1952
    %1976 = vmatpush.msra.mxu0 %v1951
    %1977 = vmatpush.msra.mxu0 %v1950
    %1978 = vmatpush.msra.mxu0 %v1949
    %1979 = vmatpush.msra.mxu0 %v1948
    %1980 = vmatmul.f32.gmra.mxu0 %v1959
    %v1981 = vpop.f32.mrf.mxu0
    %v1982 = vadd.f32 %v1957, %v1981
    %1983 = vmatmul.f32.gmra.mxu0 %v1962
    %v1984 = vpop.f32.mrf.mxu0
    %v1985 = vadd.f32 %v1957, %v1984
    %1986 = vdwg.mxu0
    %v1987 = vadd.f32 %v1909, %v1982
    %v1988 = vadd.f32 %v1910, %v1985
    %v1989 = vld [vmem:[%s4 + $0xe] sm:$0x1]
    %v1990 = vld [vmem:[%s4 + $0xf] sm:$0x1]
    %v1991 = vsel %vm55, %v1987, 0.0
    %1992 = vadd.xlane.f32.xlu0 %v1991
    %v1993 = vpop.xlane.xlu0 %1992
    %v1994 = vsel %vm55, %v1988, 0.0
    %1995 = vadd.xlane.f32.xlu0 %v1994
    %v1996 = vpop.xlane.xlu0 %1995
    %v1997 = vmul.f32 %v1993, %v886
    %v1998 = vmul.f32 %v1996, %v886
    %v1999 = vsub.f32 %v1987, %v1997
    %v2000 = vsub.f32 %v1988, %v1998
    %v2001 = vmul.f32 %v1999, %v1999
    %v2002 = vmul.f32 %v2000, %v2000
    %v2003 = vsel %vm55, %v2001, 0.0
    %2004 = vadd.xlane.f32.xlu0 %v2003
    %v2005 = vpop.xlane.xlu0 %2004
    %v2006 = vsel %vm55, %v2002, 0.0
    %2007 = vadd.xlane.f32.xlu0 %v2006
    %v2008 = vpop.xlane.xlu0 %2007
    %v2009 = vmul.f32 %v2005, %v886
    %v2010 = vmul.f32 %v2008, %v886
    %v2011 = vadd.f32 %v2009, 1e-05
    %v2012 = vadd.f32 %v2010, 1e-05
    %v2013 = vrsqrt.pop %v2011
    %v2014 = vmul.f32 %v2013, %v2011
    %v2015 = vmul.f32 %v2014, %v2013
    %v2016 = vmul.f32 0.5, %v2015
    %v2017 = vsub.f32 1.5, %v2016
    %v2018 = vmul.f32 %v2013, %v2017
    %vm2019 = vweird.f32 %v2011
    %vm2020 = vweird.f32 %v2013
    %vm2021 = vmor %vm2019, %vm2020
    %v2022 = vsel %vm2021, %v2013, %v2018
    %v2023 = vrsqrt.pop %v2012
    %v2024 = vmul.f32 %v2023, %v2012
    %v2025 = vmul.f32 %v2024, %v2023
    %v2026 = vmul.f32 0.5, %v2025
    %v2027 = vsub.f32 1.5, %v2026
    %v2028 = vmul.f32 %v2023, %v2027
    %vm2029 = vweird.f32 %v2012
    %vm2030 = vweird.f32 %v2023
    %vm2031 = vmor %vm2029, %vm2030
    %v2032 = vsel %vm2031, %v2023, %v2028
    %v2033 = vmul.f32 %v1999, %v2022
    %v2034 = vmul.f32 %v2000, %v2032
    %v2035 = vperm.slane %v1989, 0
    %v2036 = vmul.f32 %v2033, %v2035
    %v2037 = vmul.f32 %v2034, %v2035
    %v2038 = vperm.slane %v1990, 0
    %v2039 = vadd.f32 %v2036, %v2038
    %v2040 = vadd.f32 %v2037, %v2038
    %2041 = vst.msk [vmem:[#allocation5] sm:$0xff] %vm55, %v2039
    %2042 = vst.msk [vmem:[#allocation5 + $0x8] sm:$0xff] %vm55, %v2040
    %v2043 = vld [vmem:[#allocation5] ss:$8 sm:$0x3]
    %v2044 = vld [vmem:[%s2] sm:$0x3]
    %v2045 = vld [vmem:[#allocation2 + $0x140] sm:$0xff]
    %v2046 = vld [vmem:[#allocation2 + $0x148] sm:$0xff]
    %v2047 = vld [vmem:[#allocation2 + $0x150] sm:$0xff]
    %v2048 = vld [vmem:[#allocation2 + $0x158] sm:$0xff]
    %v2049 = vld [vmem:[#allocation2 + $0x160] sm:$0xff]
    %v2050 = vld [vmem:[#allocation2 + $0x168] sm:$0xff]
    %v2052 = vsel %vm55, %v2043, 0
    %2054 = vmatpush.msra.mxu0 0.0
    %2055 = vmatpush.msra.mxu0 0.0
    %2056 = vmatpush.msra.mxu0 0.0
    %2057 = vmatpush.msra.mxu0 0.0
    %2058 = vmatpush.msra.mxu0 0.0
    %2059 = vmatpush.msra.mxu0 0.0
    %2060 = vmatpush.msra.mxu0 0.0
    %2061 = vmatpush.msra.mxu0 0.0
    %2062 = vmatpush.msra.mxu0 0.0
    %2063 = vmatpush.msra.mxu0 0.0
    %2064 = vmatpush.msra.mxu0 0.0
    %2065 = vmatpush.msra.mxu0 0.0
    %2066 = vmatpush.msra.mxu0 %v2050
    %2067 = vmatpush.msra.mxu0 %v2049
    %2068 = vmatpush.msra.mxu0 %v2048
    %2069 = vmatpush.msra.mxu0 %v2047
    %2070 = vmatmul.f32.gmra.mxu0 %v2052
    %v2071 = vpop.f32.mrf.mxu0
    %v2072 = vadd.f32 0.0, %v2071
    %2073 = vdwg.mxu0
    %vm2074 = vcmask 130048
    %v2076 = vsel %vm2074, %v2044, 0
    %2078 = vmatpush.msra.mxu0 0.0
    %2079 = vmatpush.msra.mxu0 0.0
    %2080 = vmatpush.msra.mxu0 0.0
    %2081 = vmatpush.msra.mxu0 0.0
    %2082 = vmatpush.msra.mxu0 0.0
    %2083 = vmatpush.msra.mxu0 0.0
    %2084 = vmatpush.msra.mxu0 0.0
    %2085 = vmatpush.msra.mxu0 0.0
    %2086 = vmatpush.msra.mxu0 0.0
    %2087 = vmatpush.msra.mxu0 0.0
    %2088 = vmatpush.msra.mxu0 0.0
    %2089 = vmatpush.msra.mxu0 0.0
    %2090 = vmatpush.msra.mxu0 0.0
    %2091 = vmatpush.msra.mxu0 0.0
    %2092 = vmatpush.msra.mxu0 %v2046
    %2093 = vmatpush.msra.mxu0 %v2045
    %2094 = vmatmul.f32.gmra.mxu0 %v2076
    %v2095 = vpop.f32.mrf.mxu0
    %v2096 = vadd.f32 %v2072, %v2095
    %2097 = vdwg.mxu0
    %v2098 = vld [vmem:[%s4 + $0x10] sm:$0x1]
    %v2099 = vperm.slane %v2098, 0
    %v2100 = vadd.f32 %v2096, %v2099
    %v2101 = vmax.f32 %v2100, 0.0
    %v2102 = vld [vmem:[#allocation2 + $0x170] sm:$0xff]
    %v2103 = vld [vmem:[#allocation2 + $0x178] sm:$0xff]
    %v2104 = vld [vmem:[#allocation2 + $0x180] sm:$0xff]
    %v2105 = vld [vmem:[#allocation2 + $0x188] sm:$0xff]
    %v2106 = vld [vmem:[#allocation2 + $0x190] sm:$0xff]
    %v2107 = vld [vmem:[#allocation2 + $0x198] sm:$0xff]
    %v2108 = vld [vmem:[#allocation2 + $0x1a0] sm:$0xff]
    %v2109 = vld [vmem:[#allocation2 + $0x1a8] sm:$0xff]
    %v2110 = vld [vmem:[#allocation2 + $0x1b0] sm:$0xff]
    %v2111 = vld [vmem:[#allocation2 + $0x1b8] sm:$0xff]
    %v2112 = vld [vmem:[#allocation2 + $0x1c0] sm:$0xff]
    %v2113 = vld [vmem:[#allocation2 + $0x1c8] sm:$0xff]
    %v2114 = vld [vmem:[#allocation2 + $0x1d0] sm:$0xff]
    %v2115 = vld [vmem:[#allocation2 + $0x1d8] sm:$0xff]
    %v2116 = vld [vmem:[#allocation2 + $0x1e0] sm:$0xff]
    %v2117 = vld [vmem:[#allocation2 + $0x1e8] sm:$0xff]
    %v2118 = vld [vmem:[%s4 + $0x11] sm:$0x1]
    %v2119 = vperm.slane %v2118, 0
    %2120 = vmatpush.msra.mxu0 %v2117
    %2121 = vmatpush.msra.mxu0 %v2116
    %2122 = vmatpush.msra.mxu0 %v2115
    %2123 = vmatpush.msra.mxu0 %v2114
    %2124 = vmatpush.msra.mxu0 %v2113
    %2125 = vmatpush.msra.mxu0 %v2112
    %2126 = vmatpush.msra.mxu0 %v2111
    %2127 = vmatpush.msra.mxu0 %v2110
    %2128 = vmatpush.msra.mxu0 %v2109
    %2129 = vmatpush.msra.mxu0 %v2108
    %2130 = vmatpush.msra.mxu0 %v2107
    %2131 = vmatpush.msra.mxu0 %v2106
    %2132 = vmatpush.msra.mxu0 %v2105
    %2133 = vmatpush.msra.mxu0 %v2104
    %2134 = vmatpush.msra.mxu0 %v2103
    %2135 = vmatpush.msra.mxu0 %v2102
    %2136 = vmatmul.f32.gmra.mxu0 %v2101
    %v2137 = vpop.f32.mrf.mxu0
    %v2138 = vadd.f32 %v2119, %v2137
    %2139 = vdwg.mxu0
    %v2140 = vmax.f32 %v2138, 0.0
    %v2141 = vld [vmem:[#allocation2 + $0x1f0] sm:$0xff]
    %v2142 = vld [vmem:[#allocation2 + $0x1f8] sm:$0xff]
    %v2143 = vld [vmem:[#allocation2 + $0x200] sm:$0xff]
    %v2144 = vld [vmem:[#allocation2 + $0x208] sm:$0xff]
    %v2145 = vld [vmem:[#allocation2 + $0x210] sm:$0xff]
    %v2146 = vld [vmem:[#allocation2 + $0x218] sm:$0xff]
    %v2147 = vld [vmem:[#allocation2 + $0x220] sm:$0xff]
    %v2148 = vld [vmem:[#allocation2 + $0x228] sm:$0xff]
    %v2149 = vld [vmem:[#allocation2 + $0x230] sm:$0xff]
    %v2150 = vld [vmem:[#allocation2 + $0x238] sm:$0xff]
    %v2151 = vld [vmem:[#allocation2 + $0x240] sm:$0xff]
    %v2152 = vld [vmem:[#allocation2 + $0x248] sm:$0xff]
    %v2153 = vld [vmem:[#allocation2 + $0x250] sm:$0xff]
    %v2154 = vld [vmem:[#allocation2 + $0x258] sm:$0xff]
    %v2155 = vld [vmem:[#allocation2 + $0x260] sm:$0xff]
    %v2156 = vld [vmem:[#allocation2 + $0x268] sm:$0xff]
    %v2157 = vld [vmem:[%s4 + $0x12] sm:$0x1]
    %v2158 = vperm.slane %v2157, 0
    %2159 = vmatpush.msra.mxu0 %v2156
    %2160 = vmatpush.msra.mxu0 %v2155
    %2161 = vmatpush.msra.mxu0 %v2154
    %2162 = vmatpush.msra.mxu0 %v2153
    %2163 = vmatpush.msra.mxu0 %v2152
    %2164 = vmatpush.msra.mxu0 %v2151
    %2165 = vmatpush.msra.mxu0 %v2150
    %2166 = vmatpush.msra.mxu0 %v2149
    %2167 = vmatpush.msra.mxu0 %v2148
    %2168 = vmatpush.msra.mxu0 %v2147
    %2169 = vmatpush.msra.mxu0 %v2146
    %2170 = vmatpush.msra.mxu0 %v2145
    %2171 = vmatpush.msra.mxu0 %v2144
    %2172 = vmatpush.msra.mxu0 %v2143
    %2173 = vmatpush.msra.mxu0 %v2142
    %2174 = vmatpush.msra.mxu0 %v2141
    %2175 = vmatmul.f32.gmra.mxu0 %v2140
    %v2176 = vpop.f32.mrf.mxu0
    %v2177 = vadd.f32 %v2158, %v2176
    %2178 = vdwg.mxu0
    %2179 = vst [vmem:[%s6] sm:$0x3] %v2177
    // Predicated region
    $region26: #{transformer_forward.1} parent=1 // pred_check
      _
    $region27: #{transformer_forward.1} parent=1 // pred_check_branch
      %2181 = sbr.rel (0) target = $region29
    $region28: #{transformer_forward.1} parent=1 // pred_region
      %2183 = vsyncadd [#allocation4], 0
      %s2184 = sshll.u32 [#allocation5], 4
      %s2185 = int_to_ptr.vmem [resolvable:$true] %s2184
      %s2186 = sshll.u32 %s5, 4
      %s2187 = int_to_ptr.hbm [resolvable:$true] %s2186
      %2192 = dma.vmem_to_hbm [thread:$0]  %s2185, 256, %s2187, [#allocation4], 128, 128, 8
    $region29: #{transformer_forward.1} parent=1 // pred_fallthru
      _
    // Predicated region
    $region30: #{transformer_forward.1} parent=1 // pred_check
      _
    $region31: #{transformer_forward.1} parent=1 // pred_check_branch
      %2194 = sbr.rel (0) target = $region33
    $region32: #{transformer_forward.1} parent=1 // pred_region
      _
    $region33: #{transformer_forward.1} parent=1 // pred_fallthru
      _
    // Predicated region
    $region34: #{transformer_forward.1} parent=1 // pred_check
      _
    $region35: #{transformer_forward.1} parent=1 // pred_check_branch
      %2196 = sbr.rel (0) target = $region37
    $region36: #{transformer_forward.1} parent=1 // pred_region
      %2198 = dma.done [#allocation4], 256
    $region37: #{transformer_forward.1} parent=1 // pred_fallthru
      _
    // Predicated region
    $region38: #{transformer_forward.1} parent=1 // pred_check
      _
    $region39: #{transformer_forward.1} parent=1 // pred_check_branch
      %2200 = sbr.rel (0) target = $region41
    $region40: #{transformer_forward.1} parent=1 // pred_region
      _
    $region41: #{transformer_forward.1} parent=1 // pred_fallthru
      _
    %2201 = vsyncpa [#allocation3], 1
    %2202 = vsyncpa [#allocation4], 1

</llo_original>
